<compile_context>
chip_gen: v7x
topology: tpu7x:2x2x1
jax: 0.10.0
libtpu: 0.0.40
codegen_flags: <defaults>
</compile_context>

<pallas_src>
import functools

import jax
import jax.numpy as jnp
from jax import lax
from jax.experimental import pallas as pl
from jax.experimental.pallas import tpu as pltpu


def _round_up(a, m):
    return ((a + m - 1) // m) * m


def _cnn_kernel(x_ref, w1_ref, b1_ref, w2_ref, b2_ref, o_ref, pad_ref, taps_ref,
                *, W, kh, kw, C, ML, compute_dtype):
    # x_ref    : (Nb, L)             VMEM, L = H*W (lane-dense flat images)
    # w1_ref   : (C*KK,)             SMEM, conv1 weights flattened as [c, di, dj]
    # b1_ref   : (C,)                SMEM
    # w2_ref   : (C,)                SMEM, 1x1 conv weights
    # b2_ref   : (1,)                SMEM
    # o_ref    : (Nb, L)             VMEM
    # pad_ref  : (Nb, ML+L+MR)       VMEM scratch; zero margins emulate spatial zero padding
    # taps_ref : (Nb, KK*L)          VMEM scratch (compute dtype); one shifted/masked copy per tap
    Nb, L = x_ref.shape
    KK = kh * kw
    ph, pw = (kh - 1) // 2, (kw - 1) // 2
    MR = pad_ref.shape[1] - ML - L
    cdt = compute_dtype

    # Stage the zero-padded flat images: clear only the margins (interior is overwritten below).
    if ML > 0:
        pad_ref[:, :ML] = jnp.zeros((Nb, ML), pad_ref.dtype)
    if MR > 0:
        pad_ref[:, ML + L:] = jnp.zeros((Nb, MR), pad_ref.dtype)
    pad_ref[:, ML:ML + L] = x_ref[...]

    # ---- Pass 1: one flat-shifted, column-masked copy of the input per conv1 tap ----------
    # A tap (di, dj) is a flat shift by (di-ph)*W + (dj-pw); row under/overflow lands in the
    # zero margins, column wrap across rows is zeroed by a per-tap lane mask (built from iota,
    # so no mask input / DMA is needed).
    lane = lax.broadcasted_iota(jnp.int32, (1, L), 1)
    if (W & (W - 1)) == 0:
        col = jnp.bitwise_and(lane, W - 1)
    else:
        col = lane % W  # non-power-of-2 spatial width fallback
    for di in range(kh):
        for dj in range(kw):
            t = di * kw + dj
            s = (di - ph) * W + (dj - pw)
            sh = pad_ref[:, ML + s: ML + s + L]          # (Nb, L) slice of the ref (no xp value)
            oj = dj - pw
            if oj != 0:                                   # wrap only possible when dj != pw
                mask = jnp.logical_and(col + oj >= 0, col + oj < W).astype(sh.dtype)
                sh = sh * mask                            # (Nb, L) * (1, L) broadcast
            taps_ref[:, t * L:(t + 1) * L] = sh.astype(taps_ref.dtype)

    # ---- Pass 2: conv1 (+bias, ReLU) and 1x1 conv2 (+bias, ReLU), RC rows at a time --------
    # Chunking keeps acc/out_acc at <= ~8 vregs each so nothing spills even at Nb=256.
    # Weights/biases are SMEM scalars (scalar x vector rides the free scalar slot).
    def chunk(r0, rc):
        out_acc = None
        for c in range(C):
            # first tap + conv1 bias folded into the init (saves zeros-init + bias add)
            acc = (w1_ref[c * KK].astype(cdt) * taps_ref[r0:r0 + rc, 0:L]
                   + b1_ref[c].astype(cdt))
            for t in range(1, KK):
                acc = acc + (w1_ref[c * KK + t].astype(cdt)
                             * taps_ref[r0:r0 + rc, t * L:(t + 1) * L])
            h1 = jnp.maximum(acc, 0)                      # conv1 ReLU
            contrib = w2_ref[c].astype(cdt) * h1          # 1x1 conv2 accumulation
            out_acc = contrib if out_acc is None else out_acc + contrib
        out = jnp.maximum(out_acc.astype(jnp.float32) + b2_ref[0], 0.0)  # conv2 bias + ReLU
        o_ref[r0:r0 + rc, :] = out.astype(o_ref.dtype)

    RC = min(32, Nb)
    r0 = 0
    while r0 < Nb:
        rc = min(RC, Nb - r0)
        chunk(r0, rc)
        r0 += rc


def cnn_forward(x, w1, b1, w2, b2, *, block_n=256, compute_dtype=jnp.float32):
    """Fused forward pass of the `cnn` module.

    x  : (N, 1, H, W) float32 (PyTorch NCHW, in_channels == 1)
    w1 : (C, 1, kh, kw), b1: (C,), w2: (1, C, 1, 1), b2: (1,)
    returns (N, H_out * W_out)  ==  torch: self.cnn_model(x).view(N, -1)

    compute_dtype=jnp.bfloat16 enables a bf16 tap-MAC path for v6e/v7x (looser numerics,
    do not use on v5e). Peak throughput assumes N >= ~64 (tiny batches under-fill the
    8 sublanes of each vreg).
    """
    N, Cin, H, W = x.shape
    assert Cin == 1, "module is defined with in_channels == 1"
    C, _, kh, kw = w1.shape
    ph, pw = (kh - 1) // 2, (kw - 1) // 2
    H_out, W_out = H + 2 * ph - kh + 1, W + 2 * pw - kw + 1
    L = H * W
    KK = kh * kw
    cdt = jnp.dtype(compute_dtype)

    # Images per grid step: as large as possible (per-step overhead ~0.35us), but capped so the
    # "parallel" grid keeps >= 2 steps when the batch allows (v7x has 2 TensorCores).
    if L % 128 == 0 and N > 8:
        cap = max(8, _round_up(pl.cdiv(N, 2), 8))
        Nb = min(max(8, (block_n // 8) * 8), cap)
        if Nb >= N:
            Nb = N
    else:
        Nb = N  # full-batch block: (8,128) rule satisfied via full array dims
    num_steps = pl.cdiv(N, Nb)

    # Lane-aligned zero margins around the flat image, wide enough for the largest tap shifts.
    S_lo = ph * W + pw
    S_hi = (kh - 1 - ph) * W + (kw - 1 - pw)
    ML = _round_up(S_lo, 128)
    MR = _round_up(S_hi, 128)

    # Glue (no jnp.pad: padding is done inside the kernel; reshapes are free).
    x_flat = x.reshape(N, L).astype(jnp.float32)
    w1_k = w1.reshape(C * KK).astype(jnp.float32)   # SMEM scalars
    b1_k = b1.reshape(C).astype(jnp.float32)
    w2_k = w2.reshape(C).astype(jnp.float32)
    b2_k = b2.reshape(1).astype(jnp.float32)

    kernel = functools.partial(_cnn_kernel, W=W, kh=kh, kw=kw, C=C, ML=ML, compute_dtype=cdt)

    # VMEM budget: pad scratch + tap scratch + double-buffered x/out blocks. Only raise the
    # scoped limit when actually needed (matters on v5e, 16 MiB default, if Nb is tuned up).
    vmem_bytes = (Nb * (ML + L + MR) * 4 + Nb * KK * L * cdt.itemsize + 4 * Nb * L * 4)
    compiler_kwargs = dict(dimension_semantics=("parallel",))
    if vmem_bytes > 12 * 1024 * 1024:
        compiler_kwargs["vmem_limit_bytes"] = int(min(vmem_bytes * 3 // 2, 64 * 1024 * 1024))

    out = pl.pallas_call(
        kernel,
        out_shape=jax.ShapeDtypeStruct((N, L), jnp.float32),
        grid_spec=pltpu.PrefetchScalarGridSpec(
            num_scalar_prefetch=0,
            grid=(num_steps,),
            in_specs=[
                pl.BlockSpec((Nb, L), lambda n: (n, 0)),
                pl.BlockSpec(memory_space=pltpu.MemorySpace.SMEM),
                pl.BlockSpec(memory_space=pltpu.MemorySpace.SMEM),
                pl.BlockSpec(memory_space=pltpu.MemorySpace.SMEM),
                pl.BlockSpec(memory_space=pltpu.MemorySpace.SMEM),
            ],
            out_specs=pl.BlockSpec((Nb, L), lambda n: (n, 0)),
            scratch_shapes=[
                pltpu.VMEM((Nb, ML + L + MR), jnp.float32),   # padded flat images
                pltpu.VMEM((Nb, KK * L), cdt),                # per-tap shifted copies
            ],
        ),
        compiler_params=pltpu.CompilerParams(**compiler_kwargs),
    )(x_flat, w1_k, b1_k, w2_k, b2_k)

    # The kernel computes on the full (H, W) grid; crop only when the conv is not
    # shape-preserving (even kernel sizes). Identity (no-op) for odd kh/kw.
    if (H_out, W_out) != (H, W):
        out = out.reshape(N, H, W)[:, :H_out, :W_out].reshape(N, H_out * W_out)
    return out


def _reference(x, w1, b1, w2, b2):
    # Pure-JAX reference using lax convolutions (NCHW / OIHW, matching PyTorch).
    kh, kw = w1.shape[2], w1.shape[3]
    ph, pw = (kh - 1) // 2, (kw - 1) // 2
    h1 = lax.conv_general_dilated(
        x, w1, window_strides=(1, 1), padding=[(ph, ph), (pw, pw)],
        dimension_numbers=("NCHW", "OIHW", "NCHW"))
    h1 = jnp.maximum(h1 + b1[None, :, None, None], 0.0)
    h2 = lax.conv_general_dilated(
        h1, w2, window_strides=(1, 1), padding=[(0, 0), (0, 0)],
        dimension_numbers=("NCHW", "OIHW", "NCHW"))
    h2 = jnp.maximum(h2 + b2[None, :, None, None], 0.0)
    return h2.reshape(h2.shape[0], -1)


def _run_case(key, N, H, W, kh, kw, C=10, **fwd_kwargs):
    kx, k1, k2, k3, k4 = jax.random.split(key, 5)
    x = jax.random.normal(kx, (N, 1, H, W), jnp.float32)
    w1 = jax.random.normal(k1, (C, 1, kh, kw), jnp.float32) * 0.1
    b1 = jax.random.normal(k2, (C,), jnp.float32) * 0.1
    w2 = jax.random.normal(k3, (1, C, 1, 1), jnp.float32) * 0.1
    b2 = jax.random.normal(k4, (1,), jnp.float32) * 0.1

    out = jax.block_until_ready(cnn_forward(x, w1, b1, w2, b2, **fwd_kwargs))
    ref = _reference(x, w1, b1, w2, b2)

    ph, pw = (kh - 1) // 2, (kw - 1) // 2
    H_out, W_out = H + 2 * ph - kh + 1, W + 2 * pw - kw + 1
    assert out.shape == ref.shape == (N, H_out * W_out), (out.shape, ref.shape)
    err = float(jnp.max(jnp.abs(out - ref)))
    assert jnp.allclose(out, ref, atol=1e-4, rtol=1e-4), err


if __name__ == "__main__":
    key = jax.random.PRNGKey(0)
    keys = jax.random.split(key, 4)

    # Canonical small shape: batch=2, single input channel, 16x16 spatial, 3x3 sub-region.
    _run_case(keys[0], N=2, H=16, W=16, kh=3, kw=3)
    # Multi-step grid with a tail block (N % Nb != 0) and the chunked pass-2 loop exercised.
    _run_case(keys[1], N=150, H=16, W=16, kh=3, kw=3)
    # Even kernel size -> non-shape-preserving conv; exercises the crop path and ML == 0.
    _run_case(keys[2], N=2, H=16, W=16, kh=2, kw=2)
    # Rectangular sub-region (non-square taps / masks).
    _run_case(keys[3], N=4, H=16, W=16, kh=3, kw=5)

    print("KERNEL_OK")
</pallas_src>

<mosaic_0001>
module attributes {stable_mosaic.version = 11 : i64} {
  func.func @_cnn_kernel(%arg0: i32, %arg1: memref<2x256xf32, #tpu.memory_space<vmem>>, %arg2: memref<90xf32, #tpu.memory_space<smem>>, %arg3: memref<10xf32, #tpu.memory_space<smem>>, %arg4: memref<10xf32, #tpu.memory_space<smem>>, %arg5: memref<1xf32, #tpu.memory_space<smem>>, %arg6: memref<2x256xf32, #tpu.memory_space<vmem>>, %arg7: memref<2x512xf32, #tpu.memory_space<vmem>>, %arg8: memref<2x2304xf32, #tpu.memory_space<vmem>>) attributes {dimension_semantics = [#tpu.dimension_semantics<parallel>], iteration_bounds = array<i64: 1>, scalar_prefetch = 0 : i64, scratch_operands = 2 : i64, tpu.core_type = #tpu.core_type<tc>, window_params = [{transform_indices = @transform_0, window_bounds = array<i64: 2, 256>}, {transform_indices = @transform_1, window_bounds = array<i64: 90>}, {transform_indices = @transform_2, window_bounds = array<i64: 10>}, {transform_indices = @transform_3, window_bounds = array<i64: 10>}, {transform_indices = @transform_4, window_bounds = array<i64: 1>}, {transform_indices = @transform_5, window_bounds = array<i64: 2, 256>}]} {
    %cst = arith.constant 0.000000e+00 : f32
    %0 = vector.broadcast %cst : f32 to vector<2x128xf32>
    %c0 = arith.constant 0 : index
    %c0_0 = arith.constant 0 : index
    %1 = vector.load %arg7[%c0, %c0_0] : memref<2x512xf32, #tpu.memory_space<vmem>>, vector<2x128xf32>
    tpu.vector_store %arg7[%c0, %c0_0], %0 {strides = array<i32>} : memref<2x512xf32, #tpu.memory_space<vmem>>, vector<2x128xf32>,
    %cst_1 = arith.constant 0.000000e+00 : f32
    %2 = vector.broadcast %cst_1 : f32 to vector<2x128xf32>
    %c0_2 = arith.constant 0 : index
    %c384 = arith.constant 384 : index
    %3 = vector.load %arg7[%c0_2, %c384] : memref<2x512xf32, #tpu.memory_space<vmem>>, vector<2x128xf32>
    tpu.vector_store %arg7[%c0_2, %c384], %2 {strides = array<i32>} : memref<2x512xf32, #tpu.memory_space<vmem>>, vector<2x128xf32>,
    %c0_3 = arith.constant 0 : index
    %c0_4 = arith.constant 0 : index
    %4 = vector.load %arg1[%c0_3, %c0_4] : memref<2x256xf32, #tpu.memory_space<vmem>>, vector<2x256xf32>
    %c0_5 = arith.constant 0 : index
    %c128 = arith.constant 128 : index
    %5 = vector.load %arg7[%c0_5, %c128] : memref<2x512xf32, #tpu.memory_space<vmem>>, vector<2x256xf32>
    tpu.vector_store %arg7[%c0_5, %c128], %4 {strides = array<i32>} : memref<2x512xf32, #tpu.memory_space<vmem>>, vector<2x256xf32>,
    %6 = tpu.iota {dimensions = array<i32: 1>} : vector<1x256xi32>
    %c15_i32 = arith.constant 15 : i32
    %7 = vector.broadcast %c15_i32 : i32 to vector<1x256xi32>
    %8 = arith.andi %6, %7 : vector<1x256xi32>
    %c0_6 = arith.constant 0 : index
    %c111 = arith.constant 111 : index
    %9 = vector.load %arg7[%c0_6, %c111] : memref<2x512xf32, #tpu.memory_space<vmem>>, vector<2x256xf32>
    %c-1_i32 = arith.constant -1 : i32
    %10 = vector.broadcast %c-1_i32 : i32 to vector<1x256xi32>
    %11 = arith.addi %8, %10 : vector<1x256xi32>
    %c0_i32 = arith.constant 0 : i32
    %12 = vector.broadcast %c0_i32 : i32 to vector<1x256xi32>
    %13 = arith.cmpi sge, %11, %12 : vector<1x256xi32>
    %c-1_i32_7 = arith.constant -1 : i32
    %14 = vector.broadcast %c-1_i32_7 : i32 to vector<1x256xi32>
    %15 = arith.addi %8, %14 : vector<1x256xi32>
    %c16_i32 = arith.constant 16 : i32
    %16 = vector.broadcast %c16_i32 : i32 to vector<1x256xi32>
    %17 = arith.cmpi slt, %15, %16 : vector<1x256xi32>
    %18 = arith.andi %13, %17 : vector<1x256xi1>
    %19 = arith.extui %18 : vector<1x256xi1> to vector<1x256xi32>
    %20 = arith.sitofp %19 : vector<1x256xi32> to vector<1x256xf32>
    %21 = vector.broadcast %20 : vector<1x256xf32> to vector<2x256xf32>
    %22 = arith.mulf %9, %21 : vector<2x256xf32>
    %c0_8 = arith.constant 0 : index
    %c0_9 = arith.constant 0 : index
    %23 = vector.load %arg8[%c0_8, %c0_9] : memref<2x2304xf32, #tpu.memory_space<vmem>>, vector<2x256xf32>
    tpu.vector_store %arg8[%c0_8, %c0_9], %22 {strides = array<i32>} : memref<2x2304xf32, #tpu.memory_space<vmem>>, vector<2x256xf32>,
    %c0_10 = arith.constant 0 : index
    %c112 = arith.constant 112 : index
    %24 = vector.load %arg7[%c0_10, %c112] : memref<2x512xf32, #tpu.memory_space<vmem>>, vector<2x256xf32>
    %c0_11 = arith.constant 0 : index
    %c256 = arith.constant 256 : index
    %25 = vector.load %arg8[%c0_11, %c256] : memref<2x2304xf32, #tpu.memory_space<vmem>>, vector<2x256xf32>
    tpu.vector_store %arg8[%c0_11, %c256], %24 {strides = array<i32>} : memref<2x2304xf32, #tpu.memory_space<vmem>>, vector<2x256xf32>,
    %c0_12 = arith.constant 0 : index
    %c113 = arith.constant 113 : index
    %26 = vector.load %arg7[%c0_12, %c113] : memref<2x512xf32, #tpu.memory_space<vmem>>, vector<2x256xf32>
    %c1_i32 = arith.constant 1 : i32
    %27 = vector.broadcast %c1_i32 : i32 to vector<1x256xi32>
    %28 = arith.addi %8, %27 : vector<1x256xi32>
    %c0_i32_13 = arith.constant 0 : i32
    %29 = vector.broadcast %c0_i32_13 : i32 to vector<1x256xi32>
    %30 = arith.cmpi sge, %28, %29 : vector<1x256xi32>
    %c1_i32_14 = arith.constant 1 : i32
    %31 = vector.broadcast %c1_i32_14 : i32 to vector<1x256xi32>
    %32 = arith.addi %8, %31 : vector<1x256xi32>
    %c16_i32_15 = arith.constant 16 : i32
    %33 = vector.broadcast %c16_i32_15 : i32 to vector<1x256xi32>
    %34 = arith.cmpi slt, %32, %33 : vector<1x256xi32>
    %35 = arith.andi %30, %34 : vector<1x256xi1>
    %36 = arith.extui %35 : vector<1x256xi1> to vector<1x256xi32>
    %37 = arith.sitofp %36 : vector<1x256xi32> to vector<1x256xf32>
    %38 = vector.broadcast %37 : vector<1x256xf32> to vector<2x256xf32>
    %39 = arith.mulf %26, %38 : vector<2x256xf32>
    %c0_16 = arith.constant 0 : index
    %c512 = arith.constant 512 : index
    %40 = vector.load %arg8[%c0_16, %c512] : memref<2x2304xf32, #tpu.memory_space<vmem>>, vector<2x256xf32>
    tpu.vector_store %arg8[%c0_16, %c512], %39 {strides = array<i32>} : memref<2x2304xf32, #tpu.memory_space<vmem>>, vector<2x256xf32>,
    %c0_17 = arith.constant 0 : index
    %c127 = arith.constant 127 : index
    %41 = vector.load %arg7[%c0_17, %c127] : memref<2x512xf32, #tpu.memory_space<vmem>>, vector<2x256xf32>
    %c-1_i32_18 = arith.constant -1 : i32
    %42 = vector.broadcast %c-1_i32_18 : i32 to vector<1x256xi32>
    %43 = arith.addi %8, %42 : vector<1x256xi32>
    %c0_i32_19 = arith.constant 0 : i32
    %44 = vector.broadcast %c0_i32_19 : i32 to vector<1x256xi32>
    %45 = arith.cmpi sge, %43, %44 : vector<1x256xi32>
    %c-1_i32_20 = arith.constant -1 : i32
    %46 = vector.broadcast %c-1_i32_20 : i32 to vector<1x256xi32>
    %47 = arith.addi %8, %46 : vector<1x256xi32>
    %c16_i32_21 = arith.constant 16 : i32
    %48 = vector.broadcast %c16_i32_21 : i32 to vector<1x256xi32>
    %49 = arith.cmpi slt, %47, %48 : vector<1x256xi32>
    %50 = arith.andi %45, %49 : vector<1x256xi1>
    %51 = arith.extui %50 : vector<1x256xi1> to vector<1x256xi32>
    %52 = arith.sitofp %51 : vector<1x256xi32> to vector<1x256xf32>
    %53 = vector.broadcast %52 : vector<1x256xf32> to vector<2x256xf32>
    %54 = arith.mulf %41, %53 : vector<2x256xf32>
    %c0_22 = arith.constant 0 : index
    %c768 = arith.constant 768 : index
    %55 = vector.load %arg8[%c0_22, %c768] : memref<2x2304xf32, #tpu.memory_space<vmem>>, vector<2x256xf32>
    tpu.vector_store %arg8[%c0_22, %c768], %54 {strides = array<i32>} : memref<2x2304xf32, #tpu.memory_space<vmem>>, vector<2x256xf32>,
    %c0_23 = arith.constant 0 : index
    %c128_24 = arith.constant 128 : index
    %56 = vector.load %arg7[%c0_23, %c128_24] : memref<2x512xf32, #tpu.memory_space<vmem>>, vector<2x256xf32>
    %c0_25 = arith.constant 0 : index
    %c1024 = arith.constant 1024 : index
    %57 = vector.load %arg8[%c0_25, %c1024] : memref<2x2304xf32, #tpu.memory_space<vmem>>, vector<2x256xf32>
    tpu.vector_store %arg8[%c0_25, %c1024], %56 {strides = array<i32>} : memref<2x2304xf32, #tpu.memory_space<vmem>>, vector<2x256xf32>,
    %c0_26 = arith.constant 0 : index
    %c129 = arith.constant 129 : index
    %58 = vector.load %arg7[%c0_26, %c129] : memref<2x512xf32, #tpu.memory_space<vmem>>, vector<2x256xf32>
    %c1_i32_27 = arith.constant 1 : i32
    %59 = vector.broadcast %c1_i32_27 : i32 to vector<1x256xi32>
    %60 = arith.addi %8, %59 : vector<1x256xi32>
    %c0_i32_28 = arith.constant 0 : i32
    %61 = vector.broadcast %c0_i32_28 : i32 to vector<1x256xi32>
    %62 = arith.cmpi sge, %60, %61 : vector<1x256xi32>
    %c1_i32_29 = arith.constant 1 : i32
    %63 = vector.broadcast %c1_i32_29 : i32 to vector<1x256xi32>
    %64 = arith.addi %8, %63 : vector<1x256xi32>
    %c16_i32_30 = arith.constant 16 : i32
    %65 = vector.broadcast %c16_i32_30 : i32 to vector<1x256xi32>
    %66 = arith.cmpi slt, %64, %65 : vector<1x256xi32>
    %67 = arith.andi %62, %66 : vector<1x256xi1>
    %68 = arith.extui %67 : vector<1x256xi1> to vector<1x256xi32>
    %69 = arith.sitofp %68 : vector<1x256xi32> to vector<1x256xf32>
    %70 = vector.broadcast %69 : vector<1x256xf32> to vector<2x256xf32>
    %71 = arith.mulf %58, %70 : vector<2x256xf32>
    %c0_31 = arith.constant 0 : index
    %c1280 = arith.constant 1280 : index
    %72 = vector.load %arg8[%c0_31, %c1280] : memref<2x2304xf32, #tpu.memory_space<vmem>>, vector<2x256xf32>
    tpu.vector_store %arg8[%c0_31, %c1280], %71 {strides = array<i32>} : memref<2x2304xf32, #tpu.memory_space<vmem>>, vector<2x256xf32>,
    %c0_32 = arith.constant 0 : index
    %c143 = arith.constant 143 : index
    %73 = vector.load %arg7[%c0_32, %c143] : memref<2x512xf32, #tpu.memory_space<vmem>>, vector<2x256xf32>
    %c-1_i32_33 = arith.constant -1 : i32
    %74 = vector.broadcast %c-1_i32_33 : i32 to vector<1x256xi32>
    %75 = arith.addi %8, %74 : vector<1x256xi32>
    %c0_i32_34 = arith.constant 0 : i32
    %76 = vector.broadcast %c0_i32_34 : i32 to vector<1x256xi32>
    %77 = arith.cmpi sge, %75, %76 : vector<1x256xi32>
    %c-1_i32_35 = arith.constant -1 : i32
    %78 = vector.broadcast %c-1_i32_35 : i32 to vector<1x256xi32>
    %79 = arith.addi %8, %78 : vector<1x256xi32>
    %c16_i32_36 = arith.constant 16 : i32
    %80 = vector.broadcast %c16_i32_36 : i32 to vector<1x256xi32>
    %81 = arith.cmpi slt, %79, %80 : vector<1x256xi32>
    %82 = arith.andi %77, %81 : vector<1x256xi1>
    %83 = arith.extui %82 : vector<1x256xi1> to vector<1x256xi32>
    %84 = arith.sitofp %83 : vector<1x256xi32> to vector<1x256xf32>
    %85 = vector.broadcast %84 : vector<1x256xf32> to vector<2x256xf32>
    %86 = arith.mulf %73, %85 : vector<2x256xf32>
    %c0_37 = arith.constant 0 : index
    %c1536 = arith.constant 1536 : index
    %87 = vector.load %arg8[%c0_37, %c1536] : memref<2x2304xf32, #tpu.memory_space<vmem>>, vector<2x256xf32>
    tpu.vector_store %arg8[%c0_37, %c1536], %86 {strides = array<i32>} : memref<2x2304xf32, #tpu.memory_space<vmem>>, vector<2x256xf32>,
    %c0_38 = arith.constant 0 : index
    %c144 = arith.constant 144 : index
    %88 = vector.load %arg7[%c0_38, %c144] : memref<2x512xf32, #tpu.memory_space<vmem>>, vector<2x256xf32>
    %c0_39 = arith.constant 0 : index
    %c1792 = arith.constant 1792 : index
    %89 = vector.load %arg8[%c0_39, %c1792] : memref<2x2304xf32, #tpu.memory_space<vmem>>, vector<2x256xf32>
    tpu.vector_store %arg8[%c0_39, %c1792], %88 {strides = array<i32>} : memref<2x2304xf32, #tpu.memory_space<vmem>>, vector<2x256xf32>,
    %c0_40 = arith.constant 0 : index
    %c145 = arith.constant 145 : index
    %90 = vector.load %arg7[%c0_40, %c145] : memref<2x512xf32, #tpu.memory_space<vmem>>, vector<2x256xf32>
    %c1_i32_41 = arith.constant 1 : i32
    %91 = vector.broadcast %c1_i32_41 : i32 to vector<1x256xi32>
    %92 = arith.addi %8, %91 : vector<1x256xi32>
    %c0_i32_42 = arith.constant 0 : i32
    %93 = vector.broadcast %c0_i32_42 : i32 to vector<1x256xi32>
    %94 = arith.cmpi sge, %92, %93 : vector<1x256xi32>
    %c1_i32_43 = arith.constant 1 : i32
    %95 = vector.broadcast %c1_i32_43 : i32 to vector<1x256xi32>
    %96 = arith.addi %8, %95 : vector<1x256xi32>
    %c16_i32_44 = arith.constant 16 : i32
    %97 = vector.broadcast %c16_i32_44 : i32 to vector<1x256xi32>
    %98 = arith.cmpi slt, %96, %97 : vector<1x256xi32>
    %99 = arith.andi %94, %98 : vector<1x256xi1>
    %100 = arith.extui %99 : vector<1x256xi1> to vector<1x256xi32>
    %101 = arith.sitofp %100 : vector<1x256xi32> to vector<1x256xf32>
    %102 = vector.broadcast %101 : vector<1x256xf32> to vector<2x256xf32>
    %103 = arith.mulf %90, %102 : vector<2x256xf32>
    %c0_45 = arith.constant 0 : index
    %c2048 = arith.constant 2048 : index
    %104 = vector.load %arg8[%c0_45, %c2048] : memref<2x2304xf32, #tpu.memory_space<vmem>>, vector<2x256xf32>
    tpu.vector_store %arg8[%c0_45, %c2048], %103 {strides = array<i32>} : memref<2x2304xf32, #tpu.memory_space<vmem>>, vector<2x256xf32>,
    %c0_46 = arith.constant 0 : index
    %105 = memref.load %arg2[%c0_46] : memref<90xf32, #tpu.memory_space<smem>>
    %c0_47 = arith.constant 0 : index
    %c0_48 = arith.constant 0 : index
    %106 = vector.load %arg8[%c0_47, %c0_48] : memref<2x2304xf32, #tpu.memory_space<vmem>>, vector<2x256xf32>
    %107 = vector.broadcast %105 : f32 to vector<2x256xf32>
    %108 = arith.mulf %107, %106 : vector<2x256xf32>
    %c0_49 = arith.constant 0 : index
    %109 = memref.load %arg3[%c0_49] : memref<10xf32, #tpu.memory_space<smem>>
    %110 = vector.broadcast %109 : f32 to vector<2x256xf32>
    %111 = arith.addf %108, %110 : vector<2x256xf32>
    %c1 = arith.constant 1 : index
    %112 = memref.load %arg2[%c1] : memref<90xf32, #tpu.memory_space<smem>>
    %c0_50 = arith.constant 0 : index
    %c256_51 = arith.constant 256 : index
    %113 = vector.load %arg8[%c0_50, %c256_51] : memref<2x2304xf32, #tpu.memory_space<vmem>>, vector<2x256xf32>
    %114 = vector.broadcast %112 : f32 to vector<2x256xf32>
    %115 = arith.mulf %114, %113 : vector<2x256xf32>
    %116 = arith.addf %111, %115 : vector<2x256xf32>
    %c2 = arith.constant 2 : index
    %117 = memref.load %arg2[%c2] : memref<90xf32, #tpu.memory_space<smem>>
    %c0_52 = arith.constant 0 : index
    %c512_53 = arith.constant 512 : index
    %118 = vector.load %arg8[%c0_52, %c512_53] : memref<2x2304xf32, #tpu.memory_space<vmem>>, vector<2x256xf32>
    %119 = vector.broadcast %117 : f32 to vector<2x256xf32>
    %120 = arith.mulf %119, %118 : vector<2x256xf32>
    %121 = arith.addf %116, %120 : vector<2x256xf32>
    %c3 = arith.constant 3 : index
    %122 = memref.load %arg2[%c3] : memref<90xf32, #tpu.memory_space<smem>>
    %c0_54 = arith.constant 0 : index
    %c768_55 = arith.constant 768 : index
    %123 = vector.load %arg8[%c0_54, %c768_55] : memref<2x2304xf32, #tpu.memory_space<vmem>>, vector<2x256xf32>
    %124 = vector.broadcast %122 : f32 to vector<2x256xf32>
    %125 = arith.mulf %124, %123 : vector<2x256xf32>
    %126 = arith.addf %121, %125 : vector<2x256xf32>
    %c4 = arith.constant 4 : index
    %127 = memref.load %arg2[%c4] : memref<90xf32, #tpu.memory_space<smem>>
    %c0_56 = arith.constant 0 : index
    %c1024_57 = arith.constant 1024 : index
    %128 = vector.load %arg8[%c0_56, %c1024_57] : memref<2x2304xf32, #tpu.memory_space<vmem>>, vector<2x256xf32>
    %129 = vector.broadcast %127 : f32 to vector<2x256xf32>
    %130 = arith.mulf %129, %128 : vector<2x256xf32>
    %131 = arith.addf %126, %130 : vector<2x256xf32>
    %c5 = arith.constant 5 : index
    %132 = memref.load %arg2[%c5] : memref<90xf32, #tpu.memory_space<smem>>
    %c0_58 = arith.constant 0 : index
    %c1280_59 = arith.constant 1280 : index
    %133 = vector.load %arg8[%c0_58, %c1280_59] : memref<2x2304xf32, #tpu.memory_space<vmem>>, vector<2x256xf32>
    %134 = vector.broadcast %132 : f32 to vector<2x256xf32>
    %135 = arith.mulf %134, %133 : vector<2x256xf32>
    %136 = arith.addf %131, %135 : vector<2x256xf32>
    %c6 = arith.constant 6 : index
    %137 = memref.load %arg2[%c6] : memref<90xf32, #tpu.memory_space<smem>>
    %c0_60 = arith.constant 0 : index
    %c1536_61 = arith.constant 1536 : index
    %138 = vector.load %arg8[%c0_60, %c1536_61] : memref<2x2304xf32, #tpu.memory_space<vmem>>, vector<2x256xf32>
    %139 = vector.broadcast %137 : f32 to vector<2x256xf32>
    %140 = arith.mulf %139, %138 : vector<2x256xf32>
    %141 = arith.addf %136, %140 : vector<2x256xf32>
    %c7 = arith.constant 7 : index
    %142 = memref.load %arg2[%c7] : memref<90xf32, #tpu.memory_space<smem>>
    %c0_62 = arith.constant 0 : index
    %c1792_63 = arith.constant 1792 : index
    %143 = vector.load %arg8[%c0_62, %c1792_63] : memref<2x2304xf32, #tpu.memory_space<vmem>>, vector<2x256xf32>
    %144 = vector.broadcast %142 : f32 to vector<2x256xf32>
    %145 = arith.mulf %144, %143 : vector<2x256xf32>
    %146 = arith.addf %141, %145 : vector<2x256xf32>
    %c8 = arith.constant 8 : index
    %147 = memref.load %arg2[%c8] : memref<90xf32, #tpu.memory_space<smem>>
    %c0_64 = arith.constant 0 : index
    %c2048_65 = arith.constant 2048 : index
    %148 = vector.load %arg8[%c0_64, %c2048_65] : memref<2x2304xf32, #tpu.memory_space<vmem>>, vector<2x256xf32>
    %149 = vector.broadcast %147 : f32 to vector<2x256xf32>
    %150 = arith.mulf %149, %148 : vector<2x256xf32>
    %151 = arith.addf %146, %150 : vector<2x256xf32>
    %cst_66 = arith.constant 0.000000e+00 : f32
    %152 = vector.broadcast %cst_66 : f32 to vector<2x256xf32>
    %153 = arith.maximumf %151, %152 : vector<2x256xf32>
    %c0_67 = arith.constant 0 : index
    %154 = memref.load %arg4[%c0_67] : memref<10xf32, #tpu.memory_space<smem>>
    %155 = vector.broadcast %154 : f32 to vector<2x256xf32>
    %156 = arith.mulf %155, %153 : vector<2x256xf32>
    %c9 = arith.constant 9 : index
    %157 = memref.load %arg2[%c9] : memref<90xf32, #tpu.memory_space<smem>>
    %c0_68 = arith.constant 0 : index
    %c0_69 = arith.constant 0 : index
    %158 = vector.load %arg8[%c0_68, %c0_69] : memref<2x2304xf32, #tpu.memory_space<vmem>>, vector<2x256xf32>
    %159 = vector.broadcast %157 : f32 to vector<2x256xf32>
    %160 = arith.mulf %159, %158 : vector<2x256xf32>
    %c1_70 = arith.constant 1 : index
    %161 = memref.load %arg3[%c1_70] : memref<10xf32, #tpu.memory_space<smem>>
    %162 = vector.broadcast %161 : f32 to vector<2x256xf32>
    %163 = arith.addf %160, %162 : vector<2x256xf32>
    %c10 = arith.constant 10 : index
    %164 = memref.load %arg2[%c10] : memref<90xf32, #tpu.memory_space<smem>>
    %c0_71 = arith.constant 0 : index
    %c256_72 = arith.constant 256 : index
    %165 = vector.load %arg8[%c0_71, %c256_72] : memref<2x2304xf32, #tpu.memory_space<vmem>>, vector<2x256xf32>
    %166 = vector.broadcast %164 : f32 to vector<2x256xf32>
    %167 = arith.mulf %166, %165 : vector<2x256xf32>
    %168 = arith.addf %163, %167 : vector<2x256xf32>
    %c11 = arith.constant 11 : index
    %169 = memref.load %arg2[%c11] : memref<90xf32, #tpu.memory_space<smem>>
    %c0_73 = arith.constant 0 : index
    %c512_74 = arith.constant 512 : index
    %170 = vector.load %arg8[%c0_73, %c512_74] : memref<2x2304xf32, #tpu.memory_space<vmem>>, vector<2x256xf32>
    %171 = vector.broadcast %169 : f32 to vector<2x256xf32>
    %172 = arith.mulf %171, %170 : vector<2x256xf32>
    %173 = arith.addf %168, %172 : vector<2x256xf32>
    %c12 = arith.constant 12 : index
    %174 = memref.load %arg2[%c12] : memref<90xf32, #tpu.memory_space<smem>>
    %c0_75 = arith.constant 0 : index
    %c768_76 = arith.constant 768 : index
    %175 = vector.load %arg8[%c0_75, %c768_76] : memref<2x2304xf32, #tpu.memory_space<vmem>>, vector<2x256xf32>
    %176 = vector.broadcast %174 : f32 to vector<2x256xf32>
    %177 = arith.mulf %176, %175 : vector<2x256xf32>
    %178 = arith.addf %173, %177 : vector<2x256xf32>
    %c13 = arith.constant 13 : index
    %179 = memref.load %arg2[%c13] : memref<90xf32, #tpu.memory_space<smem>>
    %c0_77 = arith.constant 0 : index
    %c1024_78 = arith.constant 1024 : index
    %180 = vector.load %arg8[%c0_77, %c1024_78] : memref<2x2304xf32, #tpu.memory_space<vmem>>, vector<2x256xf32>
    %181 = vector.broadcast %179 : f32 to vector<2x256xf32>
    %182 = arith.mulf %181, %180 : vector<2x256xf32>
    %183 = arith.addf %178, %182 : vector<2x256xf32>
    %c14 = arith.constant 14 : index
    %184 = memref.load %arg2[%c14] : memref<90xf32, #tpu.memory_space<smem>>
    %c0_79 = arith.constant 0 : index
    %c1280_80 = arith.constant 1280 : index
    %185 = vector.load %arg8[%c0_79, %c1280_80] : memref<2x2304xf32, #tpu.memory_space<vmem>>, vector<2x256xf32>
    %186 = vector.broadcast %184 : f32 to vector<2x256xf32>
    %187 = arith.mulf %186, %185 : vector<2x256xf32>
    %188 = arith.addf %183, %187 : vector<2x256xf32>
    %c15 = arith.constant 15 : index
    %189 = memref.load %arg2[%c15] : memref<90xf32, #tpu.memory_space<smem>>
    %c0_81 = arith.constant 0 : index
    %c1536_82 = arith.constant 1536 : index
    %190 = vector.load %arg8[%c0_81, %c1536_82] : memref<2x2304xf32, #tpu.memory_space<vmem>>, vector<2x256xf32>
    %191 = vector.broadcast %189 : f32 to vector<2x256xf32>
    %192 = arith.mulf %191, %190 : vector<2x256xf32>
    %193 = arith.addf %188, %192 : vector<2x256xf32>
    %c16 = arith.constant 16 : index
    %194 = memref.load %arg2[%c16] : memref<90xf32, #tpu.memory_space<smem>>
    %c0_83 = arith.constant 0 : index
    %c1792_84 = arith.constant 1792 : index
    %195 = vector.load %arg8[%c0_83, %c1792_84] : memref<2x2304xf32, #tpu.memory_space<vmem>>, vector<2x256xf32>
    %196 = vector.broadcast %194 : f32 to vector<2x256xf32>
    %197 = arith.mulf %196, %195 : vector<2x256xf32>
    %198 = arith.addf %193, %197 : vector<2x256xf32>
    %c17 = arith.constant 17 : index
    %199 = memref.load %arg2[%c17] : memref<90xf32, #tpu.memory_space<smem>>
    %c0_85 = arith.constant 0 : index
    %c2048_86 = arith.constant 2048 : index
    %200 = vector.load %arg8[%c0_85, %c2048_86] : memref<2x2304xf32, #tpu.memory_space<vmem>>, vector<2x256xf32>
    %201 = vector.broadcast %199 : f32 to vector<2x256xf32>
    %202 = arith.mulf %201, %200 : vector<2x256xf32>
    %203 = arith.addf %198, %202 : vector<2x256xf32>
    %cst_87 = arith.constant 0.000000e+00 : f32
    %204 = vector.broadcast %cst_87 : f32 to vector<2x256xf32>
    %205 = arith.maximumf %203, %204 : vector<2x256xf32>
    %c1_88 = arith.constant 1 : index
    %206 = memref.load %arg4[%c1_88] : memref<10xf32, #tpu.memory_space<smem>>
    %207 = vector.broadcast %206 : f32 to vector<2x256xf32>
    %208 = arith.mulf %207, %205 : vector<2x256xf32>
    %209 = arith.addf %156, %208 : vector<2x256xf32>
    %c18 = arith.constant 18 : index
    %210 = memref.load %arg2[%c18] : memref<90xf32, #tpu.memory_space<smem>>
    %c0_89 = arith.constant 0 : index
    %c0_90 = arith.constant 0 : index
    %211 = vector.load %arg8[%c0_89, %c0_90] : memref<2x2304xf32, #tpu.memory_space<vmem>>, vector<2x256xf32>
    %212 = vector.broadcast %210 : f32 to vector<2x256xf32>
    %213 = arith.mulf %212, %211 : vector<2x256xf32>
    %c2_91 = arith.constant 2 : index
    %214 = memref.load %arg3[%c2_91] : memref<10xf32, #tpu.memory_space<smem>>
    %215 = vector.broadcast %214 : f32 to vector<2x256xf32>
    %216 = arith.addf %213, %215 : vector<2x256xf32>
    %c19 = arith.constant 19 : index
    %217 = memref.load %arg2[%c19] : memref<90xf32, #tpu.memory_space<smem>>
    %c0_92 = arith.constant 0 : index
    %c256_93 = arith.constant 256 : index
    %218 = vector.load %arg8[%c0_92, %c256_93] : memref<2x2304xf32, #tpu.memory_space<vmem>>, vector<2x256xf32>
    %219 = vector.broadcast %217 : f32 to vector<2x256xf32>
    %220 = arith.mulf %219, %218 : vector<2x256xf32>
    %221 = arith.addf %216, %220 : vector<2x256xf32>
    %c20 = arith.constant 20 : index
    %222 = memref.load %arg2[%c20] : memref<90xf32, #tpu.memory_space<smem>>
    %c0_94 = arith.constant 0 : index
    %c512_95 = arith.constant 512 : index
    %223 = vector.load %arg8[%c0_94, %c512_95] : memref<2x2304xf32, #tpu.memory_space<vmem>>, vector<2x256xf32>
    %224 = vector.broadcast %222 : f32 to vector<2x256xf32>
    %225 = arith.mulf %224, %223 : vector<2x256xf32>
    %226 = arith.addf %221, %225 : vector<2x256xf32>
    %c21 = arith.constant 21 : index
    %227 = memref.load %arg2[%c21] : memref<90xf32, #tpu.memory_space<smem>>
    %c0_96 = arith.constant 0 : index
    %c768_97 = arith.constant 768 : index
    %228 = vector.load %arg8[%c0_96, %c768_97] : memref<2x2304xf32, #tpu.memory_space<vmem>>, vector<2x256xf32>
    %229 = vector.broadcast %227 : f32 to vector<2x256xf32>
    %230 = arith.mulf %229, %228 : vector<2x256xf32>
    %231 = arith.addf %226, %230 : vector<2x256xf32>
    %c22 = arith.constant 22 : index
    %232 = memref.load %arg2[%c22] : memref<90xf32, #tpu.memory_space<smem>>
    %c0_98 = arith.constant 0 : index
    %c1024_99 = arith.constant 1024 : index
    %233 = vector.load %arg8[%c0_98, %c1024_99] : memref<2x2304xf32, #tpu.memory_space<vmem>>, vector<2x256xf32>
    %234 = vector.broadcast %232 : f32 to vector<2x256xf32>
    %235 = arith.mulf %234, %233 : vector<2x256xf32>
    %236 = arith.addf %231, %235 : vector<2x256xf32>
    %c23 = arith.constant 23 : index
    %237 = memref.load %arg2[%c23] : memref<90xf32, #tpu.memory_space<smem>>
    %c0_100 = arith.constant 0 : index
    %c1280_101 = arith.constant 1280 : index
    %238 = vector.load %arg8[%c0_100, %c1280_101] : memref<2x2304xf32, #tpu.memory_space<vmem>>, vector<2x256xf32>
    %239 = vector.broadcast %237 : f32 to vector<2x256xf32>
    %240 = arith.mulf %239, %238 : vector<2x256xf32>
    %241 = arith.addf %236, %240 : vector<2x256xf32>
    %c24 = arith.constant 24 : index
    %242 = memref.load %arg2[%c24] : memref<90xf32, #tpu.memory_space<smem>>
    %c0_102 = arith.constant 0 : index
    %c1536_103 = arith.constant 1536 : index
    %243 = vector.load %arg8[%c0_102, %c1536_103] : memref<2x2304xf32, #tpu.memory_space<vmem>>, vector<2x256xf32>
    %244 = vector.broadcast %242 : f32 to vector<2x256xf32>
    %245 = arith.mulf %244, %243 : vector<2x256xf32>
    %246 = arith.addf %241, %245 : vector<2x256xf32>
    %c25 = arith.constant 25 : index
    %247 = memref.load %arg2[%c25] : memref<90xf32, #tpu.memory_space<smem>>
    %c0_104 = arith.constant 0 : index
    %c1792_105 = arith.constant 1792 : index
    %248 = vector.load %arg8[%c0_104, %c1792_105] : memref<2x2304xf32, #tpu.memory_space<vmem>>, vector<2x256xf32>
    %249 = vector.broadcast %247 : f32 to vector<2x256xf32>
    %250 = arith.mulf %249, %248 : vector<2x256xf32>
    %251 = arith.addf %246, %250 : vector<2x256xf32>
    %c26 = arith.constant 26 : index
    %252 = memref.load %arg2[%c26] : memref<90xf32, #tpu.memory_space<smem>>
    %c0_106 = arith.constant 0 : index
    %c2048_107 = arith.constant 2048 : index
    %253 = vector.load %arg8[%c0_106, %c2048_107] : memref<2x2304xf32, #tpu.memory_space<vmem>>, vector<2x256xf32>
    %254 = vector.broadcast %252 : f32 to vector<2x256xf32>
    %255 = arith.mulf %254, %253 : vector<2x256xf32>
    %256 = arith.addf %251, %255 : vector<2x256xf32>
    %cst_108 = arith.constant 0.000000e+00 : f32
    %257 = vector.broadcast %cst_108 : f32 to vector<2x256xf32>
    %258 = arith.maximumf %256, %257 : vector<2x256xf32>
    %c2_109 = arith.constant 2 : index
    %259 = memref.load %arg4[%c2_109] : memref<10xf32, #tpu.memory_space<smem>>
    %260 = vector.broadcast %259 : f32 to vector<2x256xf32>
    %261 = arith.mulf %260, %258 : vector<2x256xf32>
    %262 = arith.addf %209, %261 : vector<2x256xf32>
    %c27 = arith.constant 27 : index
    %263 = memref.load %arg2[%c27] : memref<90xf32, #tpu.memory_space<smem>>
    %c0_110 = arith.constant 0 : index
    %c0_111 = arith.constant 0 : index
    %264 = vector.load %arg8[%c0_110, %c0_111] : memref<2x2304xf32, #tpu.memory_space<vmem>>, vector<2x256xf32>
    %265 = vector.broadcast %263 : f32 to vector<2x256xf32>
    %266 = arith.mulf %265, %264 : vector<2x256xf32>
    %c3_112 = arith.constant 3 : index
    %267 = memref.load %arg3[%c3_112] : memref<10xf32, #tpu.memory_space<smem>>
    %268 = vector.broadcast %267 : f32 to vector<2x256xf32>
    %269 = arith.addf %266, %268 : vector<2x256xf32>
    %c28 = arith.constant 28 : index
    %270 = memref.load %arg2[%c28] : memref<90xf32, #tpu.memory_space<smem>>
    %c0_113 = arith.constant 0 : index
    %c256_114 = arith.constant 256 : index
    %271 = vector.load %arg8[%c0_113, %c256_114] : memref<2x2304xf32, #tpu.memory_space<vmem>>, vector<2x256xf32>
    %272 = vector.broadcast %270 : f32 to vector<2x256xf32>
    %273 = arith.mulf %272, %271 : vector<2x256xf32>
    %274 = arith.addf %269, %273 : vector<2x256xf32>
    %c29 = arith.constant 29 : index
    %275 = memref.load %arg2[%c29] : memref<90xf32, #tpu.memory_space<smem>>
    %c0_115 = arith.constant 0 : index
    %c512_116 = arith.constant 512 : index
    %276 = vector.load %arg8[%c0_115, %c512_116] : memref<2x2304xf32, #tpu.memory_space<vmem>>, vector<2x256xf32>
    %277 = vector.broadcast %275 : f32 to vector<2x256xf32>
    %278 = arith.mulf %277, %276 : vector<2x256xf32>
    %279 = arith.addf %274, %278 : vector<2x256xf32>
    %c30 = arith.constant 30 : index
    %280 = memref.load %arg2[%c30] : memref<90xf32, #tpu.memory_space<smem>>
    %c0_117 = arith.constant 0 : index
    %c768_118 = arith.constant 768 : index
    %281 = vector.load %arg8[%c0_117, %c768_118] : memref<2x2304xf32, #tpu.memory_space<vmem>>, vector<2x256xf32>
    %282 = vector.broadcast %280 : f32 to vector<2x256xf32>
    %283 = arith.mulf %282, %281 : vector<2x256xf32>
    %284 = arith.addf %279, %283 : vector<2x256xf32>
    %c31 = arith.constant 31 : index
    %285 = memref.load %arg2[%c31] : memref<90xf32, #tpu.memory_space<smem>>
    %c0_119 = arith.constant 0 : index
    %c1024_120 = arith.constant 1024 : index
    %286 = vector.load %arg8[%c0_119, %c1024_120] : memref<2x2304xf32, #tpu.memory_space<vmem>>, vector<2x256xf32>
    %287 = vector.broadcast %285 : f32 to vector<2x256xf32>
    %288 = arith.mulf %287, %286 : vector<2x256xf32>
    %289 = arith.addf %284, %288 : vector<2x256xf32>
    %c32 = arith.constant 32 : index
    %290 = memref.load %arg2[%c32] : memref<90xf32, #tpu.memory_space<smem>>
    %c0_121 = arith.constant 0 : index
    %c1280_122 = arith.constant 1280 : index
    %291 = vector.load %arg8[%c0_121, %c1280_122] : memref<2x2304xf32, #tpu.memory_space<vmem>>, vector<2x256xf32>
    %292 = vector.broadcast %290 : f32 to vector<2x256xf32>
    %293 = arith.mulf %292, %291 : vector<2x256xf32>
    %294 = arith.addf %289, %293 : vector<2x256xf32>
    %c33 = arith.constant 33 : index
    %295 = memref.load %arg2[%c33] : memref<90xf32, #tpu.memory_space<smem>>
    %c0_123 = arith.constant 0 : index
    %c1536_124 = arith.constant 1536 : index
    %296 = vector.load %arg8[%c0_123, %c1536_124] : memref<2x2304xf32, #tpu.memory_space<vmem>>, vector<2x256xf32>
    %297 = vector.broadcast %295 : f32 to vector<2x256xf32>
    %298 = arith.mulf %297, %296 : vector<2x256xf32>
    %299 = arith.addf %294, %298 : vector<2x256xf32>
    %c34 = arith.constant 34 : index
    %300 = memref.load %arg2[%c34] : memref<90xf32, #tpu.memory_space<smem>>
    %c0_125 = arith.constant 0 : index
    %c1792_126 = arith.constant 1792 : index
    %301 = vector.load %arg8[%c0_125, %c1792_126] : memref<2x2304xf32, #tpu.memory_space<vmem>>, vector<2x256xf32>
    %302 = vector.broadcast %300 : f32 to vector<2x256xf32>
    %303 = arith.mulf %302, %301 : vector<2x256xf32>
    %304 = arith.addf %299, %303 : vector<2x256xf32>
    %c35 = arith.constant 35 : index
    %305 = memref.load %arg2[%c35] : memref<90xf32, #tpu.memory_space<smem>>
    %c0_127 = arith.constant 0 : index
    %c2048_128 = arith.constant 2048 : index
    %306 = vector.load %arg8[%c0_127, %c2048_128] : memref<2x2304xf32, #tpu.memory_space<vmem>>, vector<2x256xf32>
    %307 = vector.broadcast %305 : f32 to vector<2x256xf32>
    %308 = arith.mulf %307, %306 : vector<2x256xf32>
    %309 = arith.addf %304, %308 : vector<2x256xf32>
    %cst_129 = arith.constant 0.000000e+00 : f32
    %310 = vector.broadcast %cst_129 : f32 to vector<2x256xf32>
    %311 = arith.maximumf %309, %310 : vector<2x256xf32>
    %c3_130 = arith.constant 3 : index
    %312 = memref.load %arg4[%c3_130] : memref<10xf32, #tpu.memory_space<smem>>
    %313 = vector.broadcast %312 : f32 to vector<2x256xf32>
    %314 = arith.mulf %313, %311 : vector<2x256xf32>
    %315 = arith.addf %262, %314 : vector<2x256xf32>
    %c36 = arith.constant 36 : index
    %316 = memref.load %arg2[%c36] : memref<90xf32, #tpu.memory_space<smem>>
    %c0_131 = arith.constant 0 : index
    %c0_132 = arith.constant 0 : index
    %317 = vector.load %arg8[%c0_131, %c0_132] : memref<2x2304xf32, #tpu.memory_space<vmem>>, vector<2x256xf32>
    %318 = vector.broadcast %316 : f32 to vector<2x256xf32>
    %319 = arith.mulf %318, %317 : vector<2x256xf32>
    %c4_133 = arith.constant 4 : index
    %320 = memref.load %arg3[%c4_133] : memref<10xf32, #tpu.memory_space<smem>>
    %321 = vector.broadcast %320 : f32 to vector<2x256xf32>
    %322 = arith.addf %319, %321 : vector<2x256xf32>
    %c37 = arith.constant 37 : index
    %323 = memref.load %arg2[%c37] : memref<90xf32, #tpu.memory_space<smem>>
    %c0_134 = arith.constant 0 : index
    %c256_135 = arith.constant 256 : index
    %324 = vector.load %arg8[%c0_134, %c256_135] : memref<2x2304xf32, #tpu.memory_space<vmem>>, vector<2x256xf32>
    %325 = vector.broadcast %323 : f32 to vector<2x256xf32>
    %326 = arith.mulf %325, %324 : vector<2x256xf32>
    %327 = arith.addf %322, %326 : vector<2x256xf32>
    %c38 = arith.constant 38 : index
    %328 = memref.load %arg2[%c38] : memref<90xf32, #tpu.memory_space<smem>>
    %c0_136 = arith.constant 0 : index
    %c512_137 = arith.constant 512 : index
    %329 = vector.load %arg8[%c0_136, %c512_137] : memref<2x2304xf32, #tpu.memory_space<vmem>>, vector<2x256xf32>
    %330 = vector.broadcast %328 : f32 to vector<2x256xf32>
    %331 = arith.mulf %330, %329 : vector<2x256xf32>
    %332 = arith.addf %327, %331 : vector<2x256xf32>
    %c39 = arith.constant 39 : index
    %333 = memref.load %arg2[%c39] : memref<90xf32, #tpu.memory_space<smem>>
    %c0_138 = arith.constant 0 : index
    %c768_139 = arith.constant 768 : index
    %334 = vector.load %arg8[%c0_138, %c768_139] : memref<2x2304xf32, #tpu.memory_space<vmem>>, vector<2x256xf32>
    %335 = vector.broadcast %333 : f32 to vector<2x256xf32>
    %336 = arith.mulf %335, %334 : vector<2x256xf32>
    %337 = arith.addf %332, %336 : vector<2x256xf32>
    %c40 = arith.constant 40 : index
    %338 = memref.load %arg2[%c40] : memref<90xf32, #tpu.memory_space<smem>>
    %c0_140 = arith.constant 0 : index
    %c1024_141 = arith.constant 1024 : index
    %339 = vector.load %arg8[%c0_140, %c1024_141] : memref<2x2304xf32, #tpu.memory_space<vmem>>, vector<2x256xf32>
    %340 = vector.broadcast %338 : f32 to vector<2x256xf32>
    %341 = arith.mulf %340, %339 : vector<2x256xf32>
    %342 = arith.addf %337, %341 : vector<2x256xf32>
    %c41 = arith.constant 41 : index
    %343 = memref.load %arg2[%c41] : memref<90xf32, #tpu.memory_space<smem>>
    %c0_142 = arith.constant 0 : index
    %c1280_143 = arith.constant 1280 : index
    %344 = vector.load %arg8[%c0_142, %c1280_143] : memref<2x2304xf32, #tpu.memory_space<vmem>>, vector<2x256xf32>
    %345 = vector.broadcast %343 : f32 to vector<2x256xf32>
    %346 = arith.mulf %345, %344 : vector<2x256xf32>
    %347 = arith.addf %342, %346 : vector<2x256xf32>
    %c42 = arith.constant 42 : index
    %348 = memref.load %arg2[%c42] : memref<90xf32, #tpu.memory_space<smem>>
    %c0_144 = arith.constant 0 : index
    %c1536_145 = arith.constant 1536 : index
    %349 = vector.load %arg8[%c0_144, %c1536_145] : memref<2x2304xf32, #tpu.memory_space<vmem>>, vector<2x256xf32>
    %350 = vector.broadcast %348 : f32 to vector<2x256xf32>
    %351 = arith.mulf %350, %349 : vector<2x256xf32>
    %352 = arith.addf %347, %351 : vector<2x256xf32>
    %c43 = arith.constant 43 : index
    %353 = memref.load %arg2[%c43] : memref<90xf32, #tpu.memory_space<smem>>
    %c0_146 = arith.constant 0 : index
    %c1792_147 = arith.constant 1792 : index
    %354 = vector.load %arg8[%c0_146, %c1792_147] : memref<2x2304xf32, #tpu.memory_space<vmem>>, vector<2x256xf32>
    %355 = vector.broadcast %353 : f32 to vector<2x256xf32>
    %356 = arith.mulf %355, %354 : vector<2x256xf32>
    %357 = arith.addf %352, %356 : vector<2x256xf32>
    %c44 = arith.constant 44 : index
    %358 = memref.load %arg2[%c44] : memref<90xf32, #tpu.memory_space<smem>>
    %c0_148 = arith.constant 0 : index
    %c2048_149 = arith.constant 2048 : index
    %359 = vector.load %arg8[%c0_148, %c2048_149] : memref<2x2304xf32, #tpu.memory_space<vmem>>, vector<2x256xf32>
    %360 = vector.broadcast %358 : f32 to vector<2x256xf32>
    %361 = arith.mulf %360, %359 : vector<2x256xf32>
    %362 = arith.addf %357, %361 : vector<2x256xf32>
    %cst_150 = arith.constant 0.000000e+00 : f32
    %363 = vector.broadcast %cst_150 : f32 to vector<2x256xf32>
    %364 = arith.maximumf %362, %363 : vector<2x256xf32>
    %c4_151 = arith.constant 4 : index
    %365 = memref.load %arg4[%c4_151] : memref<10xf32, #tpu.memory_space<smem>>
    %366 = vector.broadcast %365 : f32 to vector<2x256xf32>
    %367 = arith.mulf %366, %364 : vector<2x256xf32>
    %368 = arith.addf %315, %367 : vector<2x256xf32>
    %c45 = arith.constant 45 : index
    %369 = memref.load %arg2[%c45] : memref<90xf32, #tpu.memory_space<smem>>
    %c0_152 = arith.constant 0 : index
    %c0_153 = arith.constant 0 : index
    %370 = vector.load %arg8[%c0_152, %c0_153] : memref<2x2304xf32, #tpu.memory_space<vmem>>, vector<2x256xf32>
    %371 = vector.broadcast %369 : f32 to vector<2x256xf32>
    %372 = arith.mulf %371, %370 : vector<2x256xf32>
    %c5_154 = arith.constant 5 : index
    %373 = memref.load %arg3[%c5_154] : memref<10xf32, #tpu.memory_space<smem>>
    %374 = vector.broadcast %373 : f32 to vector<2x256xf32>
    %375 = arith.addf %372, %374 : vector<2x256xf32>
    %c46 = arith.constant 46 : index
    %376 = memref.load %arg2[%c46] : memref<90xf32, #tpu.memory_space<smem>>
    %c0_155 = arith.constant 0 : index
    %c256_156 = arith.constant 256 : index
    %377 = vector.load %arg8[%c0_155, %c256_156] : memref<2x2304xf32, #tpu.memory_space<vmem>>, vector<2x256xf32>
    %378 = vector.broadcast %376 : f32 to vector<2x256xf32>
    %379 = arith.mulf %378, %377 : vector<2x256xf32>
    %380 = arith.addf %375, %379 : vector<2x256xf32>
    %c47 = arith.constant 47 : index
    %381 = memref.load %arg2[%c47] : memref<90xf32, #tpu.memory_space<smem>>
    %c0_157 = arith.constant 0 : index
    %c512_158 = arith.constant 512 : index
    %382 = vector.load %arg8[%c0_157, %c512_158] : memref<2x2304xf32, #tpu.memory_space<vmem>>, vector<2x256xf32>
    %383 = vector.broadcast %381 : f32 to vector<2x256xf32>
    %384 = arith.mulf %383, %382 : vector<2x256xf32>
    %385 = arith.addf %380, %384 : vector<2x256xf32>
    %c48 = arith.constant 48 : index
    %386 = memref.load %arg2[%c48] : memref<90xf32, #tpu.memory_space<smem>>
    %c0_159 = arith.constant 0 : index
    %c768_160 = arith.constant 768 : index
    %387 = vector.load %arg8[%c0_159, %c768_160] : memref<2x2304xf32, #tpu.memory_space<vmem>>, vector<2x256xf32>
    %388 = vector.broadcast %386 : f32 to vector<2x256xf32>
    %389 = arith.mulf %388, %387 : vector<2x256xf32>
    %390 = arith.addf %385, %389 : vector<2x256xf32>
    %c49 = arith.constant 49 : index
    %391 = memref.load %arg2[%c49] : memref<90xf32, #tpu.memory_space<smem>>
    %c0_161 = arith.constant 0 : index
    %c1024_162 = arith.constant 1024 : index
    %392 = vector.load %arg8[%c0_161, %c1024_162] : memref<2x2304xf32, #tpu.memory_space<vmem>>, vector<2x256xf32>
    %393 = vector.broadcast %391 : f32 to vector<2x256xf32>
    %394 = arith.mulf %393, %392 : vector<2x256xf32>
    %395 = arith.addf %390, %394 : vector<2x256xf32>
    %c50 = arith.constant 50 : index
    %396 = memref.load %arg2[%c50] : memref<90xf32, #tpu.memory_space<smem>>
    %c0_163 = arith.constant 0 : index
    %c1280_164 = arith.constant 1280 : index
    %397 = vector.load %arg8[%c0_163, %c1280_164] : memref<2x2304xf32, #tpu.memory_space<vmem>>, vector<2x256xf32>
    %398 = vector.broadcast %396 : f32 to vector<2x256xf32>
    %399 = arith.mulf %398, %397 : vector<2x256xf32>
    %400 = arith.addf %395, %399 : vector<2x256xf32>
    %c51 = arith.constant 51 : index
    %401 = memref.load %arg2[%c51] : memref<90xf32, #tpu.memory_space<smem>>
    %c0_165 = arith.constant 0 : index
    %c1536_166 = arith.constant 1536 : index
    %402 = vector.load %arg8[%c0_165, %c1536_166] : memref<2x2304xf32, #tpu.memory_space<vmem>>, vector<2x256xf32>
    %403 = vector.broadcast %401 : f32 to vector<2x256xf32>
    %404 = arith.mulf %403, %402 : vector<2x256xf32>
    %405 = arith.addf %400, %404 : vector<2x256xf32>
    %c52 = arith.constant 52 : index
    %406 = memref.load %arg2[%c52] : memref<90xf32, #tpu.memory_space<smem>>
    %c0_167 = arith.constant 0 : index
    %c1792_168 = arith.constant 1792 : index
    %407 = vector.load %arg8[%c0_167, %c1792_168] : memref<2x2304xf32, #tpu.memory_space<vmem>>, vector<2x256xf32>
    %408 = vector.broadcast %406 : f32 to vector<2x256xf32>
    %409 = arith.mulf %408, %407 : vector<2x256xf32>
    %410 = arith.addf %405, %409 : vector<2x256xf32>
    %c53 = arith.constant 53 : index
    %411 = memref.load %arg2[%c53] : memref<90xf32, #tpu.memory_space<smem>>
    %c0_169 = arith.constant 0 : index
    %c2048_170 = arith.constant 2048 : index
    %412 = vector.load %arg8[%c0_169, %c2048_170] : memref<2x2304xf32, #tpu.memory_space<vmem>>, vector<2x256xf32>
    %413 = vector.broadcast %411 : f32 to vector<2x256xf32>
    %414 = arith.mulf %413, %412 : vector<2x256xf32>
    %415 = arith.addf %410, %414 : vector<2x256xf32>
    %cst_171 = arith.constant 0.000000e+00 : f32
    %416 = vector.broadcast %cst_171 : f32 to vector<2x256xf32>
    %417 = arith.maximumf %415, %416 : vector<2x256xf32>
    %c5_172 = arith.constant 5 : index
    %418 = memref.load %arg4[%c5_172] : memref<10xf32, #tpu.memory_space<smem>>
    %419 = vector.broadcast %418 : f32 to vector<2x256xf32>
    %420 = arith.mulf %419, %417 : vector<2x256xf32>
    %421 = arith.addf %368, %420 : vector<2x256xf32>
    %c54 = arith.constant 54 : index
    %422 = memref.load %arg2[%c54] : memref<90xf32, #tpu.memory_space<smem>>
    %c0_173 = arith.constant 0 : index
    %c0_174 = arith.constant 0 : index
    %423 = vector.load %arg8[%c0_173, %c0_174] : memref<2x2304xf32, #tpu.memory_space<vmem>>, vector<2x256xf32>
    %424 = vector.broadcast %422 : f32 to vector<2x256xf32>
    %425 = arith.mulf %424, %423 : vector<2x256xf32>
    %c6_175 = arith.constant 6 : index
    %426 = memref.load %arg3[%c6_175] : memref<10xf32, #tpu.memory_space<smem>>
    %427 = vector.broadcast %426 : f32 to vector<2x256xf32>
    %428 = arith.addf %425, %427 : vector<2x256xf32>
    %c55 = arith.constant 55 : index
    %429 = memref.load %arg2[%c55] : memref<90xf32, #tpu.memory_space<smem>>
    %c0_176 = arith.constant 0 : index
    %c256_177 = arith.constant 256 : index
    %430 = vector.load %arg8[%c0_176, %c256_177] : memref<2x2304xf32, #tpu.memory_space<vmem>>, vector<2x256xf32>
    %431 = vector.broadcast %429 : f32 to vector<2x256xf32>
    %432 = arith.mulf %431, %430 : vector<2x256xf32>
    %433 = arith.addf %428, %432 : vector<2x256xf32>
    %c56 = arith.constant 56 : index
    %434 = memref.load %arg2[%c56] : memref<90xf32, #tpu.memory_space<smem>>
    %c0_178 = arith.constant 0 : index
    %c512_179 = arith.constant 512 : index
    %435 = vector.load %arg8[%c0_178, %c512_179] : memref<2x2304xf32, #tpu.memory_space<vmem>>, vector<2x256xf32>
    %436 = vector.broadcast %434 : f32 to vector<2x256xf32>
    %437 = arith.mulf %436, %435 : vector<2x256xf32>
    %438 = arith.addf %433, %437 : vector<2x256xf32>
    %c57 = arith.constant 57 : index
    %439 = memref.load %arg2[%c57] : memref<90xf32, #tpu.memory_space<smem>>
    %c0_180 = arith.constant 0 : index
    %c768_181 = arith.constant 768 : index
    %440 = vector.load %arg8[%c0_180, %c768_181] : memref<2x2304xf32, #tpu.memory_space<vmem>>, vector<2x256xf32>
    %441 = vector.broadcast %439 : f32 to vector<2x256xf32>
    %442 = arith.mulf %441, %440 : vector<2x256xf32>
    %443 = arith.addf %438, %442 : vector<2x256xf32>
    %c58 = arith.constant 58 : index
    %444 = memref.load %arg2[%c58] : memref<90xf32, #tpu.memory_space<smem>>
    %c0_182 = arith.constant 0 : index
    %c1024_183 = arith.constant 1024 : index
    %445 = vector.load %arg8[%c0_182, %c1024_183] : memref<2x2304xf32, #tpu.memory_space<vmem>>, vector<2x256xf32>
    %446 = vector.broadcast %444 : f32 to vector<2x256xf32>
    %447 = arith.mulf %446, %445 : vector<2x256xf32>
    %448 = arith.addf %443, %447 : vector<2x256xf32>
    %c59 = arith.constant 59 : index
    %449 = memref.load %arg2[%c59] : memref<90xf32, #tpu.memory_space<smem>>
    %c0_184 = arith.constant 0 : index
    %c1280_185 = arith.constant 1280 : index
    %450 = vector.load %arg8[%c0_184, %c1280_185] : memref<2x2304xf32, #tpu.memory_space<vmem>>, vector<2x256xf32>
    %451 = vector.broadcast %449 : f32 to vector<2x256xf32>
    %452 = arith.mulf %451, %450 : vector<2x256xf32>
    %453 = arith.addf %448, %452 : vector<2x256xf32>
    %c60 = arith.constant 60 : index
    %454 = memref.load %arg2[%c60] : memref<90xf32, #tpu.memory_space<smem>>
    %c0_186 = arith.constant 0 : index
    %c1536_187 = arith.constant 1536 : index
    %455 = vector.load %arg8[%c0_186, %c1536_187] : memref<2x2304xf32, #tpu.memory_space<vmem>>, vector<2x256xf32>
    %456 = vector.broadcast %454 : f32 to vector<2x256xf32>
    %457 = arith.mulf %456, %455 : vector<2x256xf32>
    %458 = arith.addf %453, %457 : vector<2x256xf32>
    %c61 = arith.constant 61 : index
    %459 = memref.load %arg2[%c61] : memref<90xf32, #tpu.memory_space<smem>>
    %c0_188 = arith.constant 0 : index
    %c1792_189 = arith.constant 1792 : index
    %460 = vector.load %arg8[%c0_188, %c1792_189] : memref<2x2304xf32, #tpu.memory_space<vmem>>, vector<2x256xf32>
    %461 = vector.broadcast %459 : f32 to vector<2x256xf32>
    %462 = arith.mulf %461, %460 : vector<2x256xf32>
    %463 = arith.addf %458, %462 : vector<2x256xf32>
    %c62 = arith.constant 62 : index
    %464 = memref.load %arg2[%c62] : memref<90xf32, #tpu.memory_space<smem>>
    %c0_190 = arith.constant 0 : index
    %c2048_191 = arith.constant 2048 : index
    %465 = vector.load %arg8[%c0_190, %c2048_191] : memref<2x2304xf32, #tpu.memory_space<vmem>>, vector<2x256xf32>
    %466 = vector.broadcast %464 : f32 to vector<2x256xf32>
    %467 = arith.mulf %466, %465 : vector<2x256xf32>
    %468 = arith.addf %463, %467 : vector<2x256xf32>
    %cst_192 = arith.constant 0.000000e+00 : f32
    %469 = vector.broadcast %cst_192 : f32 to vector<2x256xf32>
    %470 = arith.maximumf %468, %469 : vector<2x256xf32>
    %c6_193 = arith.constant 6 : index
    %471 = memref.load %arg4[%c6_193] : memref<10xf32, #tpu.memory_space<smem>>
    %472 = vector.broadcast %471 : f32 to vector<2x256xf32>
    %473 = arith.mulf %472, %470 : vector<2x256xf32>
    %474 = arith.addf %421, %473 : vector<2x256xf32>
    %c63 = arith.constant 63 : index
    %475 = memref.load %arg2[%c63] : memref<90xf32, #tpu.memory_space<smem>>
    %c0_194 = arith.constant 0 : index
    %c0_195 = arith.constant 0 : index
    %476 = vector.load %arg8[%c0_194, %c0_195] : memref<2x2304xf32, #tpu.memory_space<vmem>>, vector<2x256xf32>
    %477 = vector.broadcast %475 : f32 to vector<2x256xf32>
    %478 = arith.mulf %477, %476 : vector<2x256xf32>
    %c7_196 = arith.constant 7 : index
    %479 = memref.load %arg3[%c7_196] : memref<10xf32, #tpu.memory_space<smem>>
    %480 = vector.broadcast %479 : f32 to vector<2x256xf32>
    %481 = arith.addf %478, %480 : vector<2x256xf32>
    %c64 = arith.constant 64 : index
    %482 = memref.load %arg2[%c64] : memref<90xf32, #tpu.memory_space<smem>>
    %c0_197 = arith.constant 0 : index
    %c256_198 = arith.constant 256 : index
    %483 = vector.load %arg8[%c0_197, %c256_198] : memref<2x2304xf32, #tpu.memory_space<vmem>>, vector<2x256xf32>
    %484 = vector.broadcast %482 : f32 to vector<2x256xf32>
    %485 = arith.mulf %484, %483 : vector<2x256xf32>
    %486 = arith.addf %481, %485 : vector<2x256xf32>
    %c65 = arith.constant 65 : index
    %487 = memref.load %arg2[%c65] : memref<90xf32, #tpu.memory_space<smem>>
    %c0_199 = arith.constant 0 : index
    %c512_200 = arith.constant 512 : index
    %488 = vector.load %arg8[%c0_199, %c512_200] : memref<2x2304xf32, #tpu.memory_space<vmem>>, vector<2x256xf32>
    %489 = vector.broadcast %487 : f32 to vector<2x256xf32>
    %490 = arith.mulf %489, %488 : vector<2x256xf32>
    %491 = arith.addf %486, %490 : vector<2x256xf32>
    %c66 = arith.constant 66 : index
    %492 = memref.load %arg2[%c66] : memref<90xf32, #tpu.memory_space<smem>>
    %c0_201 = arith.constant 0 : index
    %c768_202 = arith.constant 768 : index
    %493 = vector.load %arg8[%c0_201, %c768_202] : memref<2x2304xf32, #tpu.memory_space<vmem>>, vector<2x256xf32>
    %494 = vector.broadcast %492 : f32 to vector<2x256xf32>
    %495 = arith.mulf %494, %493 : vector<2x256xf32>
    %496 = arith.addf %491, %495 : vector<2x256xf32>
    %c67 = arith.constant 67 : index
    %497 = memref.load %arg2[%c67] : memref<90xf32, #tpu.memory_space<smem>>
    %c0_203 = arith.constant 0 : index
    %c1024_204 = arith.constant 1024 : index
    %498 = vector.load %arg8[%c0_203, %c1024_204] : memref<2x2304xf32, #tpu.memory_space<vmem>>, vector<2x256xf32>
    %499 = vector.broadcast %497 : f32 to vector<2x256xf32>
    %500 = arith.mulf %499, %498 : vector<2x256xf32>
    %501 = arith.addf %496, %500 : vector<2x256xf32>
    %c68 = arith.constant 68 : index
    %502 = memref.load %arg2[%c68] : memref<90xf32, #tpu.memory_space<smem>>
    %c0_205 = arith.constant 0 : index
    %c1280_206 = arith.constant 1280 : index
    %503 = vector.load %arg8[%c0_205, %c1280_206] : memref<2x2304xf32, #tpu.memory_space<vmem>>, vector<2x256xf32>
    %504 = vector.broadcast %502 : f32 to vector<2x256xf32>
    %505 = arith.mulf %504, %503 : vector<2x256xf32>
    %506 = arith.addf %501, %505 : vector<2x256xf32>
    %c69 = arith.constant 69 : index
    %507 = memref.load %arg2[%c69] : memref<90xf32, #tpu.memory_space<smem>>
    %c0_207 = arith.constant 0 : index
    %c1536_208 = arith.constant 1536 : index
    %508 = vector.load %arg8[%c0_207, %c1536_208] : memref<2x2304xf32, #tpu.memory_space<vmem>>, vector<2x256xf32>
    %509 = vector.broadcast %507 : f32 to vector<2x256xf32>
    %510 = arith.mulf %509, %508 : vector<2x256xf32>
    %511 = arith.addf %506, %510 : vector<2x256xf32>
    %c70 = arith.constant 70 : index
    %512 = memref.load %arg2[%c70] : memref<90xf32, #tpu.memory_space<smem>>
    %c0_209 = arith.constant 0 : index
    %c1792_210 = arith.constant 1792 : index
    %513 = vector.load %arg8[%c0_209, %c1792_210] : memref<2x2304xf32, #tpu.memory_space<vmem>>, vector<2x256xf32>
    %514 = vector.broadcast %512 : f32 to vector<2x256xf32>
    %515 = arith.mulf %514, %513 : vector<2x256xf32>
    %516 = arith.addf %511, %515 : vector<2x256xf32>
    %c71 = arith.constant 71 : index
    %517 = memref.load %arg2[%c71] : memref<90xf32, #tpu.memory_space<smem>>
    %c0_211 = arith.constant 0 : index
    %c2048_212 = arith.constant 2048 : index
    %518 = vector.load %arg8[%c0_211, %c2048_212] : memref<2x2304xf32, #tpu.memory_space<vmem>>, vector<2x256xf32>
    %519 = vector.broadcast %517 : f32 to vector<2x256xf32>
    %520 = arith.mulf %519, %518 : vector<2x256xf32>
    %521 = arith.addf %516, %520 : vector<2x256xf32>
    %cst_213 = arith.constant 0.000000e+00 : f32
    %522 = vector.broadcast %cst_213 : f32 to vector<2x256xf32>
    %523 = arith.maximumf %521, %522 : vector<2x256xf32>
    %c7_214 = arith.constant 7 : index
    %524 = memref.load %arg4[%c7_214] : memref<10xf32, #tpu.memory_space<smem>>
    %525 = vector.broadcast %524 : f32 to vector<2x256xf32>
    %526 = arith.mulf %525, %523 : vector<2x256xf32>
    %527 = arith.addf %474, %526 : vector<2x256xf32>
    %c72 = arith.constant 72 : index
    %528 = memref.load %arg2[%c72] : memref<90xf32, #tpu.memory_space<smem>>
    %c0_215 = arith.constant 0 : index
    %c0_216 = arith.constant 0 : index
    %529 = vector.load %arg8[%c0_215, %c0_216] : memref<2x2304xf32, #tpu.memory_space<vmem>>, vector<2x256xf32>
    %530 = vector.broadcast %528 : f32 to vector<2x256xf32>
    %531 = arith.mulf %530, %529 : vector<2x256xf32>
    %c8_217 = arith.constant 8 : index
    %532 = memref.load %arg3[%c8_217] : memref<10xf32, #tpu.memory_space<smem>>
    %533 = vector.broadcast %532 : f32 to vector<2x256xf32>
    %534 = arith.addf %531, %533 : vector<2x256xf32>
    %c73 = arith.constant 73 : index
    %535 = memref.load %arg2[%c73] : memref<90xf32, #tpu.memory_space<smem>>
    %c0_218 = arith.constant 0 : index
    %c256_219 = arith.constant 256 : index
    %536 = vector.load %arg8[%c0_218, %c256_219] : memref<2x2304xf32, #tpu.memory_space<vmem>>, vector<2x256xf32>
    %537 = vector.broadcast %535 : f32 to vector<2x256xf32>
    %538 = arith.mulf %537, %536 : vector<2x256xf32>
    %539 = arith.addf %534, %538 : vector<2x256xf32>
    %c74 = arith.constant 74 : index
    %540 = memref.load %arg2[%c74] : memref<90xf32, #tpu.memory_space<smem>>
    %c0_220 = arith.constant 0 : index
    %c512_221 = arith.constant 512 : index
    %541 = vector.load %arg8[%c0_220, %c512_221] : memref<2x2304xf32, #tpu.memory_space<vmem>>, vector<2x256xf32>
    %542 = vector.broadcast %540 : f32 to vector<2x256xf32>
    %543 = arith.mulf %542, %541 : vector<2x256xf32>
    %544 = arith.addf %539, %543 : vector<2x256xf32>
    %c75 = arith.constant 75 : index
    %545 = memref.load %arg2[%c75] : memref<90xf32, #tpu.memory_space<smem>>
    %c0_222 = arith.constant 0 : index
    %c768_223 = arith.constant 768 : index
    %546 = vector.load %arg8[%c0_222, %c768_223] : memref<2x2304xf32, #tpu.memory_space<vmem>>, vector<2x256xf32>
    %547 = vector.broadcast %545 : f32 to vector<2x256xf32>
    %548 = arith.mulf %547, %546 : vector<2x256xf32>
    %549 = arith.addf %544, %548 : vector<2x256xf32>
    %c76 = arith.constant 76 : index
    %550 = memref.load %arg2[%c76] : memref<90xf32, #tpu.memory_space<smem>>
    %c0_224 = arith.constant 0 : index
    %c1024_225 = arith.constant 1024 : index
    %551 = vector.load %arg8[%c0_224, %c1024_225] : memref<2x2304xf32, #tpu.memory_space<vmem>>, vector<2x256xf32>
    %552 = vector.broadcast %550 : f32 to vector<2x256xf32>
    %553 = arith.mulf %552, %551 : vector<2x256xf32>
    %554 = arith.addf %549, %553 : vector<2x256xf32>
    %c77 = arith.constant 77 : index
    %555 = memref.load %arg2[%c77] : memref<90xf32, #tpu.memory_space<smem>>
    %c0_226 = arith.constant 0 : index
    %c1280_227 = arith.constant 1280 : index
    %556 = vector.load %arg8[%c0_226, %c1280_227] : memref<2x2304xf32, #tpu.memory_space<vmem>>, vector<2x256xf32>
    %557 = vector.broadcast %555 : f32 to vector<2x256xf32>
    %558 = arith.mulf %557, %556 : vector<2x256xf32>
    %559 = arith.addf %554, %558 : vector<2x256xf32>
    %c78 = arith.constant 78 : index
    %560 = memref.load %arg2[%c78] : memref<90xf32, #tpu.memory_space<smem>>
    %c0_228 = arith.constant 0 : index
    %c1536_229 = arith.constant 1536 : index
    %561 = vector.load %arg8[%c0_228, %c1536_229] : memref<2x2304xf32, #tpu.memory_space<vmem>>, vector<2x256xf32>
    %562 = vector.broadcast %560 : f32 to vector<2x256xf32>
    %563 = arith.mulf %562, %561 : vector<2x256xf32>
    %564 = arith.addf %559, %563 : vector<2x256xf32>
    %c79 = arith.constant 79 : index
    %565 = memref.load %arg2[%c79] : memref<90xf32, #tpu.memory_space<smem>>
    %c0_230 = arith.constant 0 : index
    %c1792_231 = arith.constant 1792 : index
    %566 = vector.load %arg8[%c0_230, %c1792_231] : memref<2x2304xf32, #tpu.memory_space<vmem>>, vector<2x256xf32>
    %567 = vector.broadcast %565 : f32 to vector<2x256xf32>
    %568 = arith.mulf %567, %566 : vector<2x256xf32>
    %569 = arith.addf %564, %568 : vector<2x256xf32>
    %c80 = arith.constant 80 : index
    %570 = memref.load %arg2[%c80] : memref<90xf32, #tpu.memory_space<smem>>
    %c0_232 = arith.constant 0 : index
    %c2048_233 = arith.constant 2048 : index
    %571 = vector.load %arg8[%c0_232, %c2048_233] : memref<2x2304xf32, #tpu.memory_space<vmem>>, vector<2x256xf32>
    %572 = vector.broadcast %570 : f32 to vector<2x256xf32>
    %573 = arith.mulf %572, %571 : vector<2x256xf32>
    %574 = arith.addf %569, %573 : vector<2x256xf32>
    %cst_234 = arith.constant 0.000000e+00 : f32
    %575 = vector.broadcast %cst_234 : f32 to vector<2x256xf32>
    %576 = arith.maximumf %574, %575 : vector<2x256xf32>
    %c8_235 = arith.constant 8 : index
    %577 = memref.load %arg4[%c8_235] : memref<10xf32, #tpu.memory_space<smem>>
    %578 = vector.broadcast %577 : f32 to vector<2x256xf32>
    %579 = arith.mulf %578, %576 : vector<2x256xf32>
    %580 = arith.addf %527, %579 : vector<2x256xf32>
    %c81 = arith.constant 81 : index
    %581 = memref.load %arg2[%c81] : memref<90xf32, #tpu.memory_space<smem>>
    %c0_236 = arith.constant 0 : index
    %c0_237 = arith.constant 0 : index
    %582 = vector.load %arg8[%c0_236, %c0_237] : memref<2x2304xf32, #tpu.memory_space<vmem>>, vector<2x256xf32>
    %583 = vector.broadcast %581 : f32 to vector<2x256xf32>
    %584 = arith.mulf %583, %582 : vector<2x256xf32>
    %c9_238 = arith.constant 9 : index
    %585 = memref.load %arg3[%c9_238] : memref<10xf32, #tpu.memory_space<smem>>
    %586 = vector.broadcast %585 : f32 to vector<2x256xf32>
    %587 = arith.addf %584, %586 : vector<2x256xf32>
    %c82 = arith.constant 82 : index
    %588 = memref.load %arg2[%c82] : memref<90xf32, #tpu.memory_space<smem>>
    %c0_239 = arith.constant 0 : index
    %c256_240 = arith.constant 256 : index
    %589 = vector.load %arg8[%c0_239, %c256_240] : memref<2x2304xf32, #tpu.memory_space<vmem>>, vector<2x256xf32>
    %590 = vector.broadcast %588 : f32 to vector<2x256xf32>
    %591 = arith.mulf %590, %589 : vector<2x256xf32>
    %592 = arith.addf %587, %591 : vector<2x256xf32>
    %c83 = arith.constant 83 : index
    %593 = memref.load %arg2[%c83] : memref<90xf32, #tpu.memory_space<smem>>
    %c0_241 = arith.constant 0 : index
    %c512_242 = arith.constant 512 : index
    %594 = vector.load %arg8[%c0_241, %c512_242] : memref<2x2304xf32, #tpu.memory_space<vmem>>, vector<2x256xf32>
    %595 = vector.broadcast %593 : f32 to vector<2x256xf32>
    %596 = arith.mulf %595, %594 : vector<2x256xf32>
    %597 = arith.addf %592, %596 : vector<2x256xf32>
    %c84 = arith.constant 84 : index
    %598 = memref.load %arg2[%c84] : memref<90xf32, #tpu.memory_space<smem>>
    %c0_243 = arith.constant 0 : index
    %c768_244 = arith.constant 768 : index
    %599 = vector.load %arg8[%c0_243, %c768_244] : memref<2x2304xf32, #tpu.memory_space<vmem>>, vector<2x256xf32>
    %600 = vector.broadcast %598 : f32 to vector<2x256xf32>
    %601 = arith.mulf %600, %599 : vector<2x256xf32>
    %602 = arith.addf %597, %601 : vector<2x256xf32>
    %c85 = arith.constant 85 : index
    %603 = memref.load %arg2[%c85] : memref<90xf32, #tpu.memory_space<smem>>
    %c0_245 = arith.constant 0 : index
    %c1024_246 = arith.constant 1024 : index
    %604 = vector.load %arg8[%c0_245, %c1024_246] : memref<2x2304xf32, #tpu.memory_space<vmem>>, vector<2x256xf32>
    %605 = vector.broadcast %603 : f32 to vector<2x256xf32>
    %606 = arith.mulf %605, %604 : vector<2x256xf32>
    %607 = arith.addf %602, %606 : vector<2x256xf32>
    %c86 = arith.constant 86 : index
    %608 = memref.load %arg2[%c86] : memref<90xf32, #tpu.memory_space<smem>>
    %c0_247 = arith.constant 0 : index
    %c1280_248 = arith.constant 1280 : index
    %609 = vector.load %arg8[%c0_247, %c1280_248] : memref<2x2304xf32, #tpu.memory_space<vmem>>, vector<2x256xf32>
    %610 = vector.broadcast %608 : f32 to vector<2x256xf32>
    %611 = arith.mulf %610, %609 : vector<2x256xf32>
    %612 = arith.addf %607, %611 : vector<2x256xf32>
    %c87 = arith.constant 87 : index
    %613 = memref.load %arg2[%c87] : memref<90xf32, #tpu.memory_space<smem>>
    %c0_249 = arith.constant 0 : index
    %c1536_250 = arith.constant 1536 : index
    %614 = vector.load %arg8[%c0_249, %c1536_250] : memref<2x2304xf32, #tpu.memory_space<vmem>>, vector<2x256xf32>
    %615 = vector.broadcast %613 : f32 to vector<2x256xf32>
    %616 = arith.mulf %615, %614 : vector<2x256xf32>
    %617 = arith.addf %612, %616 : vector<2x256xf32>
    %c88 = arith.constant 88 : index
    %618 = memref.load %arg2[%c88] : memref<90xf32, #tpu.memory_space<smem>>
    %c0_251 = arith.constant 0 : index
    %c1792_252 = arith.constant 1792 : index
    %619 = vector.load %arg8[%c0_251, %c1792_252] : memref<2x2304xf32, #tpu.memory_space<vmem>>, vector<2x256xf32>
    %620 = vector.broadcast %618 : f32 to vector<2x256xf32>
    %621 = arith.mulf %620, %619 : vector<2x256xf32>
    %622 = arith.addf %617, %621 : vector<2x256xf32>
    %c89 = arith.constant 89 : index
    %623 = memref.load %arg2[%c89] : memref<90xf32, #tpu.memory_space<smem>>
    %c0_253 = arith.constant 0 : index
    %c2048_254 = arith.constant 2048 : index
    %624 = vector.load %arg8[%c0_253, %c2048_254] : memref<2x2304xf32, #tpu.memory_space<vmem>>, vector<2x256xf32>
    %625 = vector.broadcast %623 : f32 to vector<2x256xf32>
    %626 = arith.mulf %625, %624 : vector<2x256xf32>
    %627 = arith.addf %622, %626 : vector<2x256xf32>
    %cst_255 = arith.constant 0.000000e+00 : f32
    %628 = vector.broadcast %cst_255 : f32 to vector<2x256xf32>
    %629 = arith.maximumf %627, %628 : vector<2x256xf32>
    %c9_256 = arith.constant 9 : index
    %630 = memref.load %arg4[%c9_256] : memref<10xf32, #tpu.memory_space<smem>>
    %631 = vector.broadcast %630 : f32 to vector<2x256xf32>
    %632 = arith.mulf %631, %629 : vector<2x256xf32>
    %633 = arith.addf %580, %632 : vector<2x256xf32>
    %c0_257 = arith.constant 0 : index
    %634 = memref.load %arg5[%c0_257] : memref<1xf32, #tpu.memory_space<smem>>
    %635 = vector.broadcast %634 : f32 to vector<2x256xf32>
    %636 = arith.addf %633, %635 : vector<2x256xf32>
    %cst_258 = arith.constant 0.000000e+00 : f32
    %637 = vector.broadcast %cst_258 : f32 to vector<2x256xf32>
    %638 = arith.maximumf %636, %637 : vector<2x256xf32>
    %c0_259 = arith.constant 0 : index
    %c0_260 = arith.constant 0 : index
    %639 = vector.load %arg6[%c0_259, %c0_260] : memref<2x256xf32, #tpu.memory_space<vmem>>, vector<2x256xf32>
    tpu.vector_store %arg6[%c0_259, %c0_260], %638 {strides = array<i32>} : memref<2x256xf32, #tpu.memory_space<vmem>>, vector<2x256xf32>,
    return
  }
  func.func @transform_0(%arg0: i32) -> (i32, i32) {
    %c0_i32 = arith.constant 0 : i32
    %c0_i32_0 = arith.constant 0 : i32
    return %arg0, %c0_i32 : i32, i32
  }
  func.func @transform_1(%arg0: i32) -> i32 {
    %c0_i32 = arith.constant 0 : i32
    %c0_i32_0 = arith.constant 0 : i32
    return %c0_i32 : i32
  }
  func.func @transform_2(%arg0: i32) -> i32 {
    %c0_i32 = arith.constant 0 : i32
    %c0_i32_0 = arith.constant 0 : i32
    return %c0_i32 : i32
  }
  func.func @transform_3(%arg0: i32) -> i32 {
    %c0_i32 = arith.constant 0 : i32
    %c0_i32_0 = arith.constant 0 : i32
    return %c0_i32 : i32
  }
  func.func @transform_4(%arg0: i32) -> i32 {
    %c0_i32 = arith.constant 0 : i32
    %c0_i32_0 = arith.constant 0 : i32
    return %c0_i32 : i32
  }
  func.func @transform_5(%arg0: i32) -> (i32, i32) {
    %c0_i32 = arith.constant 0 : i32
    %c0_i32_0 = arith.constant 0 : i32
    return %arg0, %c0_i32 : i32, i32
  }
}

</mosaic_0001>

<llo_original>
// kernel: tpu_custom_call.1
$region0: #{tpu_custom_call.1}
  #allocation0 [shape = 'u32[]', space=smem, size = 0x4, offset = 0x4, fixed_abs, tag = 'smem constant byte address 0x4 - core index']
  #allocation1 [shape = 'u32[144,128]{1,0:T(1,128)}', space=vmem, size = 0x12000, scoped, tag = 'internal scratch']
  #allocation2 [shape = 'f32[2,512]{1,0:T(2,128)}', space=vmem, size = 0x1000, scoped, tag = 'scratch operand']
  #allocation3 [shape = 'f32[2,2304]{1,0:T(2,128)}', space=vmem, size = 0x4800, scoped, tag = 'scratch operand']
  #allocation4 [shape = 'f32[1]{0:T(128)S(6)}', space=smem, size = 0x200, scoped, tag = 'scoped memory for tpu_custom_call.1']
  %s0 = inlined_call_operand.hbm [shape: f32[2,256], index: 0, kind: input, shape index: {}]
  %s1 = inlined_call_operand.vmem [shape: f32[90], index: 1, kind: input, shape index: {}]
  %s2 = inlined_call_operand.vmem [shape: f32[10], index: 2, kind: input, shape index: {}]
  %s3 = inlined_call_operand.vmem [shape: f32[10], index: 3, kind: input, shape index: {}]
  %s4 = inlined_call_operand.<no memory space> [shape: f32[1], index: 4, kind: input, shape index: {}]
  %s5 = inlined_call_operand.hbm [shape: f32[2,256], index: 5, kind: output, shape index: {}]
  %s6 = sld [smem:[#allocation0]]
  $region46: #{tpu_custom_call.1} parent=0
    _
  %s8 = ssub.s32 1, %s6
  %s9 = scalar_select 0, %s8, %s6
  %10 = sst [smem:[#allocation4]] %s4
  $region1: #{tpu_custom_call.1} parent=0
    #allocation5 [shape = 'u8[2048]{0}', space=vmem, size = 0x800, scoped, tag = 'input window, operand 0, single buffered']
    #allocation6 [shape = 's32[1]{0}', space=sflag, size = 0x4, scoped, tag = 'scoped memory for tpu_custom_call.1']
    #allocation7 [shape = 's32[1]{0}', space=sflag, size = 0x4, scoped, tag = 'scoped memory for tpu_custom_call.1']
    #allocation8 [shape = 's32[1]{0}', space=sflag, size = 0x4, scoped, tag = 'scoped memory for tpu_custom_call.1']
    #allocation9 [shape = 'u8[512]{0}', space=smem, size = 0x200, scoped, tag = 'input window, operand 1, single buffered']
    #allocation10 [shape = 'u8[512]{0}', space=smem, size = 0x200, scoped, tag = 'input window, operand 2, single buffered']
    #allocation11 [shape = 's32[1]{0}', space=sflag, size = 0x4, scoped, tag = 'scoped memory for tpu_custom_call.1']
    #allocation12 [shape = 'u8[512]{0}', space=smem, size = 0x200, scoped, tag = 'input window, operand 3, single buffered']
    #allocation13 [shape = 'u8[2048]{0}', space=vmem, size = 0x800, scoped, tag = 'output window, operand 0, single buffered']
    %11 = vsyncpa [#allocation6], 0
    %12 = vsyncpa [#allocation8], 0
    %13 = vsyncpa [#allocation11], 0
    %14 = vsyncpa [#allocation7], 0
    // Predicated region
    $region2: #{tpu_custom_call.1} parent=1 // pred_check
      _
    $region3: #{tpu_custom_call.1} parent=1 // pred_check_branch
      %16 = sbr.rel (0) target = $region5
    $region4: #{tpu_custom_call.1} parent=1 // pred_region
      %s18 = ssub.s32 64, 64
      %19 = vsyncadd [#allocation6], %s18
      %s21 = sshll.u32 [#allocation5], 4
      %s22 = int_to_ptr.vmem [resolvable:$true] %s21
      %24 = dma.hbm_to_vmem [thread:$0]  %s0, 64, %s22, [#allocation6]
    $region5: #{tpu_custom_call.1} parent=1 // pred_fallthru
      _
    // Predicated region
    $region6: #{tpu_custom_call.1} parent=1 // pred_check
      _
    $region7: #{tpu_custom_call.1} parent=1 // pred_check_branch
      %26 = sbr.rel (0) target = $region9
    $region8: #{tpu_custom_call.1} parent=1 // pred_region
      %s28 = ssub.s32 16, 16
      %29 = vsyncadd [#allocation8], %s28
      %s31 = sshll.u32 %s1, 4
      %s32 = int_to_ptr.vmem [resolvable:$true] %s31
      %34 = dma.vmem_to_smem %s32, 16, [#allocation9], [#allocation8]
    $region9: #{tpu_custom_call.1} parent=1 // pred_fallthru
      _
    // Predicated region
    $region10: #{tpu_custom_call.1} parent=1 // pred_check
      _
    $region11: #{tpu_custom_call.1} parent=1 // pred_check_branch
      %36 = sbr.rel (0) target = $region13
    $region12: #{tpu_custom_call.1} parent=1 // pred_region
      %s38 = ssub.s32 16, 16
      %39 = vsyncadd [#allocation11], %s38
      %s41 = sshll.u32 %s2, 4
      %s42 = int_to_ptr.vmem [resolvable:$true] %s41
      %44 = dma.vmem_to_smem %s42, 16, [#allocation10], [#allocation11]
    $region13: #{tpu_custom_call.1} parent=1 // pred_fallthru
      _
    // Predicated region
    $region14: #{tpu_custom_call.1} parent=1 // pred_check
      _
    $region15: #{tpu_custom_call.1} parent=1 // pred_check_branch
      %46 = sbr.rel (0) target = $region17
    $region16: #{tpu_custom_call.1} parent=1 // pred_region
      %s48 = ssub.s32 16, 16
      %49 = vsyncadd [#allocation11], %s48
      %s51 = sshll.u32 %s3, 4
      %s52 = int_to_ptr.vmem [resolvable:$true] %s51
      %54 = dma.vmem_to_smem %s52, 16, [#allocation12], [#allocation11]
    $region17: #{tpu_custom_call.1} parent=1 // pred_fallthru
      _
    // Predicated region
    $region18: #{tpu_custom_call.1} parent=1 // pred_check
      _
    $region19: #{tpu_custom_call.1} parent=1 // pred_check_branch
      %56 = sbr.rel (0) target = $region21
    $region20: #{tpu_custom_call.1} parent=1 // pred_region
      _
    $region21: #{tpu_custom_call.1} parent=1 // pred_fallthru
      _
    // Predicated region
    $region22: #{tpu_custom_call.1} parent=1 // pred_check
      _
    $region23: #{tpu_custom_call.1} parent=1 // pred_check_branch
      %58 = sbr.rel (0) target = $region25
    $region24: #{tpu_custom_call.1} parent=1 // pred_region
      %59 = dma.done [#allocation6], 64
    $region25: #{tpu_custom_call.1} parent=1 // pred_fallthru
      _
    // Predicated region
    $region26: #{tpu_custom_call.1} parent=1 // pred_check
      _
    $region27: #{tpu_custom_call.1} parent=1 // pred_check_branch
      %61 = sbr.rel (0) target = $region29
    $region28: #{tpu_custom_call.1} parent=1 // pred_region
      %62 = dma.done [#allocation8], 16
    $region29: #{tpu_custom_call.1} parent=1 // pred_fallthru
      _
    // Predicated region
    $region30: #{tpu_custom_call.1} parent=1 // pred_check
      _
    $region31: #{tpu_custom_call.1} parent=1 // pred_check_branch
      %64 = sbr.rel (0) target = $region33
    $region32: #{tpu_custom_call.1} parent=1 // pred_region
      %65 = dma.done [#allocation11], 16
    $region33: #{tpu_custom_call.1} parent=1 // pred_fallthru
      _
    // Predicated region
    $region34: #{tpu_custom_call.1} parent=1 // pred_check
      _
    $region35: #{tpu_custom_call.1} parent=1 // pred_check_branch
      %67 = sbr.rel (0) target = $region37
    $region36: #{tpu_custom_call.1} parent=1 // pred_region
      %68 = dma.done [#allocation11], 16
    $region37: #{tpu_custom_call.1} parent=1 // pred_fallthru
      _
    %69 = sfence
    %70 = vst [vmem:[#allocation2] sm:$0x3] 0.0
    %71 = vst [vmem:[#allocation2 + $0x6] sm:$0x3] 0.0
    %v72 = vld [vmem:[#allocation5] sm:$0xf]
    %73 = vst [vmem:[#allocation2 + $0x2] sm:$0xf] %v72
    %v74 = vlaneseq
    %v75 = vand.u32 %v74, 127
    %v76 = vadd.s32 %v75, 128
    %v77 = vand.u32 %v75, 15
    %v78 = vand.u32 %v76, 15
    %v79 = vld [vmem:[#allocation2] sm:$0x3f]
    %v80 = vadd.s32 %v77, 4294967295
    %v81 = vadd.s32 %v78, 4294967295
    %vm82 = vcmp.ge.s32.totalorder %v80, 0
    %vm83 = vcmp.ge.s32.totalorder %v81, 0
    %vm84 = vcmp.lt.s32.totalorder %v80, 16
    %vm85 = vcmp.lt.s32.totalorder %v81, 16
    %vm86 = vmand %vm82, %vm84
    %vm87 = vmand %vm83, %vm85
    %v88 = vsel %vm86, 1, 0
    %v89 = vsel %vm87, 1, 0
    %v90 = vcvt.s32.f32 %v88
    %v91 = vcvt.s32.f32 %v89
    %v94 = vcombine.low %v90, %v91
    %v96 = vunpack.c.l.s4 1983009808
    %v97 = vunpack.c.0.s8 %v96
    %v98 = vlaneseq
    %v99 = vshrl.u32 %v98, 7
    %v100 = vsub.s32 %v97, %v99
    %v101 = vrot.slane %v94, %v100
    %102 = vrot.lane.b32.xlu0 %v101, 111
    %v103 = vpop.permute.xlu0 %102
    %v104 = vrot.slane %v103, 6
    %vm105 = vcmask 908288
    %v106 = vsel %vm105, %v104, %v103
    %v108 = vmul.f32 %v79, %v106
    %110 = vrot.lane.b32.xlu0 %v108, 17
    %v111 = vpop.permute.xlu0 %110
    %v112 = vrot.slane %v111, 2
    %vm113 = vcmask 138240
    %v114 = vsel %vm113, %v111, %v112
    %116 = vst [vmem:[#allocation3] sm:$0xf] %v114
    %v117 = vld [vmem:[#allocation2] sm:$0x3f]
    %119 = vrot.lane.b32.xlu0 %v117, 16
    %v120 = vpop.permute.xlu0 %119
    %v121 = vrot.slane %v120, 2
    %vm122 = vcmask 130048
    %v123 = vsel %vm122, %v120, %v121
    %125 = vst [vmem:[#allocation3 + $0x4] sm:$0xf] %v123
    %v126 = vld [vmem:[#allocation2] sm:$0x3f]
    %v127 = vadd.s32 %v77, 1
    %v128 = vadd.s32 %v78, 1
    %vm129 = vcmp.ge.s32.totalorder %v127, 0
    %vm130 = vcmp.ge.s32.totalorder %v128, 0
    %vm131 = vcmp.lt.s32.totalorder %v127, 16
    %vm132 = vcmp.lt.s32.totalorder %v128, 16
    %vm133 = vmand %vm129, %vm131
    %vm134 = vmand %vm130, %vm132
    %v135 = vsel %vm133, 1, 0
    %v136 = vsel %vm134, 1, 0
    %v137 = vcvt.s32.f32 %v135
    %v138 = vcvt.s32.f32 %v136
    %v141 = vcombine.low %v137, %v138
    %v143 = vunpack.c.l.s4 1983009808
    %v144 = vunpack.c.0.s8 %v143
    %v145 = vlaneseq
    %v146 = vshrl.u32 %v145, 7
    %v147 = vsub.s32 %v144, %v146
    %v148 = vrot.slane %v141, %v147
    %149 = vrot.lane.b32.xlu0 %v148, 113
    %v150 = vpop.permute.xlu0 %149
    %v151 = vrot.slane %v150, 6
    %vm152 = vcmask 924672
    %v153 = vsel %vm152, %v151, %v150
    %v155 = vmul.f32 %v126, %v153
    %157 = vrot.lane.b32.xlu0 %v155, 15
    %v158 = vpop.permute.xlu0 %157
    %v159 = vrot.slane %v158, 2
    %vm160 = vcmask 121856
    %v161 = vsel %vm160, %v158, %v159
    %163 = vst [vmem:[#allocation3 + $0x8] sm:$0xf] %v161
    %v164 = vld [vmem:[#allocation2] sm:$0x3f]
    %165 = vrot.lane.b32.xlu0 %v101, 127
    %v166 = vpop.permute.xlu0 %165
    %v167 = vrot.slane %v166, 6
    %vm168 = vcmask 1039360
    %v169 = vsel %vm168, %v167, %v166
    %v171 = vmul.f32 %v164, %v169
    %173 = vrot.lane.b32.xlu0 %v171, 1
    %v174 = vpop.permute.xlu0 %173
    %v175 = vrot.slane %v174, 2
    %vm176 = vcmask 7168
    %v177 = vsel %vm176, %v174, %v175
    %179 = vst [vmem:[#allocation3 + $0xc] sm:$0xf] %v177
    %v180 = vld [vmem:[#allocation2 + $0x2] sm:$0xf]
    %181 = vst [vmem:[#allocation3 + $0x10] sm:$0xf] %v180
    %v182 = vld [vmem:[#allocation2 + $0x2] sm:$0x3f]
    %183 = vrot.lane.b32.xlu0 %v148, 1
    %v184 = vpop.permute.xlu0 %183
    %v185 = vrot.slane %v184, 6
    %v186 = vsel %vm176, %v185, %v184
    %v188 = vmul.f32 %v182, %v186
    %190 = vrot.lane.b32.xlu0 %v188, 127
    %v191 = vpop.permute.xlu0 %190
    %v192 = vrot.slane %v191, 2
    %v193 = vsel %vm168, %v191, %v192
    %195 = vst [vmem:[#allocation3 + $0x14] sm:$0xf] %v193
    %v196 = vld [vmem:[#allocation2 + $0x2] sm:$0x3f]
    %197 = vrot.lane.b32.xlu0 %v101, 15
    %v198 = vpop.permute.xlu0 %197
    %v199 = vrot.slane %v198, 6
    %v200 = vsel %vm160, %v199, %v198
    %v202 = vmul.f32 %v196, %v200
    %204 = vrot.lane.b32.xlu0 %v202, 113
    %v205 = vpop.permute.xlu0 %204
    %v206 = vrot.slane %v205, 2
    %v207 = vsel %vm152, %v205, %v206
    %209 = vst [vmem:[#allocation3 + $0x18] sm:$0xf] %v207
    %v210 = vld [vmem:[#allocation2 + $0x2] sm:$0x3f]
    %212 = vrot.lane.b32.xlu0 %v210, 112
    %v213 = vpop.permute.xlu0 %212
    %v214 = vrot.slane %v213, 2
    %vm215 = vcmask 916480
    %v216 = vsel %vm215, %v213, %v214
    %218 = vst [vmem:[#allocation3 + $0x1c] sm:$0xf] %v216
    %v219 = vld [vmem:[#allocation2 + $0x2] sm:$0x3f]
    %220 = vrot.lane.b32.xlu0 %v148, 17
    %v221 = vpop.permute.xlu0 %220
    %v222 = vrot.slane %v221, 6
    %v223 = vsel %vm113, %v222, %v221
    %v225 = vmul.f32 %v219, %v223
    %227 = vrot.lane.b32.xlu0 %v225, 111
    %v228 = vpop.permute.xlu0 %227
    %v229 = vrot.slane %v228, 2
    %v230 = vsel %vm105, %v228, %v229
    %232 = vst [vmem:[#allocation3 + $0x20] sm:$0xf] %v230
    %s233 = sld [smem:[#allocation9]]
    %v234 = vld [vmem:[#allocation3] sm:$0xf]
    %v235 = vstv %s233
    %v236 = vmul.f32 %v235, %v234
    %s237 = sld [smem:[#allocation10]]
    %v238 = vstv %s237
    %v239 = vadd.f32 %v236, %v238
    %s240 = sld [smem:[#allocation9 + $0x1]]
    %v241 = vld [vmem:[#allocation3 + $0x4] sm:$0xf]
    %v242 = vstv %s240
    %v243 = vmul.f32 %v242, %v241
    %v244 = vadd.f32 %v239, %v243
    %s245 = sld [smem:[#allocation9 + $0x2]]
    %v246 = vld [vmem:[#allocation3 + $0x8] sm:$0xf]
    %v247 = vstv %s245
    %v248 = vmul.f32 %v247, %v246
    %v249 = vadd.f32 %v244, %v248
    %s250 = sld [smem:[#allocation9 + $0x3]]
    %v251 = vld [vmem:[#allocation3 + $0xc] sm:$0xf]
    %v252 = vstv %s250
    %v253 = vmul.f32 %v252, %v251
    %v254 = vadd.f32 %v249, %v253
    %s255 = sld [smem:[#allocation9 + $0x4]]
    %v256 = vld [vmem:[#allocation3 + $0x10] sm:$0xf]
    %v257 = vstv %s255
    %v258 = vmul.f32 %v257, %v256
    %v259 = vadd.f32 %v254, %v258
    %s260 = sld [smem:[#allocation9 + $0x5]]
    %v261 = vld [vmem:[#allocation3 + $0x14] sm:$0xf]
    %v262 = vstv %s260
    %v263 = vmul.f32 %v262, %v261
    %v264 = vadd.f32 %v259, %v263
    %s265 = sld [smem:[#allocation9 + $0x6]]
    %v266 = vld [vmem:[#allocation3 + $0x18] sm:$0xf]
    %v267 = vstv %s265
    %v268 = vmul.f32 %v267, %v266
    %v269 = vadd.f32 %v264, %v268
    %s270 = sld [smem:[#allocation9 + $0x7]]
    %v271 = vld [vmem:[#allocation3 + $0x1c] sm:$0xf]
    %v272 = vstv %s270
    %v273 = vmul.f32 %v272, %v271
    %v274 = vadd.f32 %v269, %v273
    %s275 = sld [smem:[#allocation9 + $0x8]]
    %v276 = vld [vmem:[#allocation3 + $0x20] sm:$0xf]
    %v277 = vstv %s275
    %v278 = vmul.f32 %v277, %v276
    %v279 = vadd.f32 %v274, %v278
    %v280 = vmax.f32 %v279, 0.0
    %s281 = sld [smem:[#allocation12]]
    %v282 = vstv %s281
    %v283 = vmul.f32 %v282, %v280
    %s284 = sld [smem:[#allocation9 + $0x9]]
    %v285 = vstv %s284
    %v286 = vmul.f32 %v285, %v234
    %s287 = sld [smem:[#allocation10 + $0x1]]
    %v288 = vstv %s287
    %v289 = vadd.f32 %v286, %v288
    %s290 = sld [smem:[#allocation9 + $0xa]]
    %v291 = vstv %s290
    %v292 = vmul.f32 %v291, %v241
    %v293 = vadd.f32 %v289, %v292
    %s294 = sld [smem:[#allocation9 + $0xb]]
    %v295 = vstv %s294
    %v296 = vmul.f32 %v295, %v246
    %v297 = vadd.f32 %v293, %v296
    %s298 = sld [smem:[#allocation9 + $0xc]]
    %v299 = vstv %s298
    %v300 = vmul.f32 %v299, %v251
    %v301 = vadd.f32 %v297, %v300
    %s302 = sld [smem:[#allocation9 + $0xd]]
    %v303 = vstv %s302
    %v304 = vmul.f32 %v303, %v256
    %v305 = vadd.f32 %v301, %v304
    %s306 = sld [smem:[#allocation9 + $0xe]]
    %v307 = vstv %s306
    %v308 = vmul.f32 %v307, %v261
    %v309 = vadd.f32 %v305, %v308
    %s310 = sld [smem:[#allocation9 + $0xf]]
    %v311 = vstv %s310
    %v312 = vmul.f32 %v311, %v266
    %v313 = vadd.f32 %v309, %v312
    %s314 = sld [smem:[#allocation9 + $0x10]]
    %v315 = vstv %s314
    %v316 = vmul.f32 %v315, %v271
    %v317 = vadd.f32 %v313, %v316
    %s318 = sld [smem:[#allocation9 + $0x11]]
    %v319 = vstv %s318
    %v320 = vmul.f32 %v319, %v276
    %v321 = vadd.f32 %v317, %v320
    %v322 = vmax.f32 %v321, 0.0
    %s323 = sld [smem:[#allocation12 + $0x1]]
    %v324 = vstv %s323
    %v325 = vmul.f32 %v324, %v322
    %v326 = vadd.f32 %v283, %v325
    %s327 = sld [smem:[#allocation9 + $0x12]]
    %v328 = vstv %s327
    %v329 = vmul.f32 %v328, %v234
    %s330 = sld [smem:[#allocation10 + $0x2]]
    %v331 = vstv %s330
    %v332 = vadd.f32 %v329, %v331
    %s333 = sld [smem:[#allocation9 + $0x13]]
    %v334 = vstv %s333
    %v335 = vmul.f32 %v334, %v241
    %v336 = vadd.f32 %v332, %v335
    %s337 = sld [smem:[#allocation9 + $0x14]]
    %v338 = vstv %s337
    %v339 = vmul.f32 %v338, %v246
    %v340 = vadd.f32 %v336, %v339
    %s341 = sld [smem:[#allocation9 + $0x15]]
    %v342 = vstv %s341
    %v343 = vmul.f32 %v342, %v251
    %v344 = vadd.f32 %v340, %v343
    %s345 = sld [smem:[#allocation9 + $0x16]]
    %v346 = vstv %s345
    %v347 = vmul.f32 %v346, %v256
    %v348 = vadd.f32 %v344, %v347
    %s349 = sld [smem:[#allocation9 + $0x17]]
    %v350 = vstv %s349
    %v351 = vmul.f32 %v350, %v261
    %v352 = vadd.f32 %v348, %v351
    %s353 = sld [smem:[#allocation9 + $0x18]]
    %v354 = vstv %s353
    %v355 = vmul.f32 %v354, %v266
    %v356 = vadd.f32 %v352, %v355
    %s357 = sld [smem:[#allocation9 + $0x19]]
    %v358 = vstv %s357
    %v359 = vmul.f32 %v358, %v271
    %v360 = vadd.f32 %v356, %v359
    %s361 = sld [smem:[#allocation9 + $0x1a]]
    %v362 = vstv %s361
    %v363 = vmul.f32 %v362, %v276
    %v364 = vadd.f32 %v360, %v363
    %v365 = vmax.f32 %v364, 0.0
    %s366 = sld [smem:[#allocation12 + $0x2]]
    %v367 = vstv %s366
    %v368 = vmul.f32 %v367, %v365
    %v369 = vadd.f32 %v326, %v368
    %s370 = sld [smem:[#allocation9 + $0x1b]]
    %v371 = vstv %s370
    %v372 = vmul.f32 %v371, %v234
    %s373 = sld [smem:[#allocation10 + $0x3]]
    %v374 = vstv %s373
    %v375 = vadd.f32 %v372, %v374
    %s376 = sld [smem:[#allocation9 + $0x1c]]
    %v377 = vstv %s376
    %v378 = vmul.f32 %v377, %v241
    %v379 = vadd.f32 %v375, %v378
    %s380 = sld [smem:[#allocation9 + $0x1d]]
    %v381 = vstv %s380
    %v382 = vmul.f32 %v381, %v246
    %v383 = vadd.f32 %v379, %v382
    %s384 = sld [smem:[#allocation9 + $0x1e]]
    %v385 = vstv %s384
    %v386 = vmul.f32 %v385, %v251
    %v387 = vadd.f32 %v383, %v386
    %s388 = sld [smem:[#allocation9 + $0x1f]]
    %v389 = vstv %s388
    %v390 = vmul.f32 %v389, %v256
    %v391 = vadd.f32 %v387, %v390
    %s392 = sld [smem:[#allocation9 + $0x20]]
    %v393 = vstv %s392
    %v394 = vmul.f32 %v393, %v261
    %v395 = vadd.f32 %v391, %v394
    %s396 = sld [smem:[#allocation9 + $0x21]]
    %v397 = vstv %s396
    %v398 = vmul.f32 %v397, %v266
    %v399 = vadd.f32 %v395, %v398
    %s400 = sld [smem:[#allocation9 + $0x22]]
    %v401 = vstv %s400
    %v402 = vmul.f32 %v401, %v271
    %v403 = vadd.f32 %v399, %v402
    %s404 = sld [smem:[#allocation9 + $0x23]]
    %v405 = vstv %s404
    %v406 = vmul.f32 %v405, %v276
    %v407 = vadd.f32 %v403, %v406
    %v408 = vmax.f32 %v407, 0.0
    %s409 = sld [smem:[#allocation12 + $0x3]]
    %v410 = vstv %s409
    %v411 = vmul.f32 %v410, %v408
    %v412 = vadd.f32 %v369, %v411
    %s413 = sld [smem:[#allocation9 + $0x24]]
    %v414 = vstv %s413
    %v415 = vmul.f32 %v414, %v234
    %s416 = sld [smem:[#allocation10 + $0x4]]
    %v417 = vstv %s416
    %v418 = vadd.f32 %v415, %v417
    %s419 = sld [smem:[#allocation9 + $0x25]]
    %v420 = vstv %s419
    %v421 = vmul.f32 %v420, %v241
    %v422 = vadd.f32 %v418, %v421
    %s423 = sld [smem:[#allocation9 + $0x26]]
    %v424 = vstv %s423
    %v425 = vmul.f32 %v424, %v246
    %v426 = vadd.f32 %v422, %v425
    %s427 = sld [smem:[#allocation9 + $0x27]]
    %v428 = vstv %s427
    %v429 = vmul.f32 %v428, %v251
    %v430 = vadd.f32 %v426, %v429
    %s431 = sld [smem:[#allocation9 + $0x28]]
    %v432 = vstv %s431
    %v433 = vmul.f32 %v432, %v256
    %v434 = vadd.f32 %v430, %v433
    %s435 = sld [smem:[#allocation9 + $0x29]]
    %v436 = vstv %s435
    %v437 = vmul.f32 %v436, %v261
    %v438 = vadd.f32 %v434, %v437
    %s439 = sld [smem:[#allocation9 + $0x2a]]
    %v440 = vstv %s439
    %v441 = vmul.f32 %v440, %v266
    %v442 = vadd.f32 %v438, %v441
    %s443 = sld [smem:[#allocation9 + $0x2b]]
    %v444 = vstv %s443
    %v445 = vmul.f32 %v444, %v271
    %v446 = vadd.f32 %v442, %v445
    %s447 = sld [smem:[#allocation9 + $0x2c]]
    %v448 = vstv %s447
    %v449 = vmul.f32 %v448, %v276
    %v450 = vadd.f32 %v446, %v449
    %v451 = vmax.f32 %v450, 0.0
    %s452 = sld [smem:[#allocation12 + $0x4]]
    %v453 = vstv %s452
    %v454 = vmul.f32 %v453, %v451
    %v455 = vadd.f32 %v412, %v454
    %s456 = sld [smem:[#allocation9 + $0x2d]]
    %v457 = vstv %s456
    %v458 = vmul.f32 %v457, %v234
    %s459 = sld [smem:[#allocation10 + $0x5]]
    %v460 = vstv %s459
    %v461 = vadd.f32 %v458, %v460
    %s462 = sld [smem:[#allocation9 + $0x2e]]
    %v463 = vstv %s462
    %v464 = vmul.f32 %v463, %v241
    %v465 = vadd.f32 %v461, %v464
    %s466 = sld [smem:[#allocation9 + $0x2f]]
    %v467 = vstv %s466
    %v468 = vmul.f32 %v467, %v246
    %v469 = vadd.f32 %v465, %v468
    %s470 = sld [smem:[#allocation9 + $0x30]]
    %v471 = vstv %s470
    %v472 = vmul.f32 %v471, %v251
    %v473 = vadd.f32 %v469, %v472
    %s474 = sld [smem:[#allocation9 + $0x31]]
    %v475 = vstv %s474
    %v476 = vmul.f32 %v475, %v256
    %v477 = vadd.f32 %v473, %v476
    %s478 = sld [smem:[#allocation9 + $0x32]]
    %v479 = vstv %s478
    %v480 = vmul.f32 %v479, %v261
    %v481 = vadd.f32 %v477, %v480
    %s482 = sld [smem:[#allocation9 + $0x33]]
    %v483 = vstv %s482
    %v484 = vmul.f32 %v483, %v266
    %v485 = vadd.f32 %v481, %v484
    %s486 = sld [smem:[#allocation9 + $0x34]]
    %v487 = vstv %s486
    %v488 = vmul.f32 %v487, %v271
    %v489 = vadd.f32 %v485, %v488
    %s490 = sld [smem:[#allocation9 + $0x35]]
    %v491 = vstv %s490
    %v492 = vmul.f32 %v491, %v276
    %v493 = vadd.f32 %v489, %v492
    %v494 = vmax.f32 %v493, 0.0
    %s495 = sld [smem:[#allocation12 + $0x5]]
    %v496 = vstv %s495
    %v497 = vmul.f32 %v496, %v494
    %v498 = vadd.f32 %v455, %v497
    %s499 = sld [smem:[#allocation9 + $0x36]]
    %v500 = vstv %s499
    %v501 = vmul.f32 %v500, %v234
    %s502 = sld [smem:[#allocation10 + $0x6]]
    %v503 = vstv %s502
    %v504 = vadd.f32 %v501, %v503
    %s505 = sld [smem:[#allocation9 + $0x37]]
    %v506 = vstv %s505
    %v507 = vmul.f32 %v506, %v241
    %v508 = vadd.f32 %v504, %v507
    %s509 = sld [smem:[#allocation9 + $0x38]]
    %v510 = vstv %s509
    %v511 = vmul.f32 %v510, %v246
    %v512 = vadd.f32 %v508, %v511
    %s513 = sld [smem:[#allocation9 + $0x39]]
    %v514 = vstv %s513
    %v515 = vmul.f32 %v514, %v251
    %v516 = vadd.f32 %v512, %v515
    %s517 = sld [smem:[#allocation9 + $0x3a]]
    %v518 = vstv %s517
    %v519 = vmul.f32 %v518, %v256
    %v520 = vadd.f32 %v516, %v519
    %s521 = sld [smem:[#allocation9 + $0x3b]]
    %v522 = vstv %s521
    %v523 = vmul.f32 %v522, %v261
    %v524 = vadd.f32 %v520, %v523
    %s525 = sld [smem:[#allocation9 + $0x3c]]
    %v526 = vstv %s525
    %v527 = vmul.f32 %v526, %v266
    %v528 = vadd.f32 %v524, %v527
    %s529 = sld [smem:[#allocation9 + $0x3d]]
    %v530 = vstv %s529
    %v531 = vmul.f32 %v530, %v271
    %v532 = vadd.f32 %v528, %v531
    %s533 = sld [smem:[#allocation9 + $0x3e]]
    %v534 = vstv %s533
    %v535 = vmul.f32 %v534, %v276
    %v536 = vadd.f32 %v532, %v535
    %v537 = vmax.f32 %v536, 0.0
    %s538 = sld [smem:[#allocation12 + $0x6]]
    %v539 = vstv %s538
    %v540 = vmul.f32 %v539, %v537
    %v541 = vadd.f32 %v498, %v540
    %s542 = sld [smem:[#allocation9 + $0x3f]]
    %v543 = vstv %s542
    %v544 = vmul.f32 %v543, %v234
    %s545 = sld [smem:[#allocation10 + $0x7]]
    %v546 = vstv %s545
    %v547 = vadd.f32 %v544, %v546
    %s548 = sld [smem:[#allocation9 + $0x40]]
    %v549 = vstv %s548
    %v550 = vmul.f32 %v549, %v241
    %v551 = vadd.f32 %v547, %v550
    %s552 = sld [smem:[#allocation9 + $0x41]]
    %v553 = vstv %s552
    %v554 = vmul.f32 %v553, %v246
    %v555 = vadd.f32 %v551, %v554
    %s556 = sld [smem:[#allocation9 + $0x42]]
    %v557 = vstv %s556
    %v558 = vmul.f32 %v557, %v251
    %v559 = vadd.f32 %v555, %v558
    %s560 = sld [smem:[#allocation9 + $0x43]]
    %v561 = vstv %s560
    %v562 = vmul.f32 %v561, %v256
    %v563 = vadd.f32 %v559, %v562
    %s564 = sld [smem:[#allocation9 + $0x44]]
    %v565 = vstv %s564
    %v566 = vmul.f32 %v565, %v261
    %v567 = vadd.f32 %v563, %v566
    %s568 = sld [smem:[#allocation9 + $0x45]]
    %v569 = vstv %s568
    %v570 = vmul.f32 %v569, %v266
    %v571 = vadd.f32 %v567, %v570
    %s572 = sld [smem:[#allocation9 + $0x46]]
    %v573 = vstv %s572
    %v574 = vmul.f32 %v573, %v271
    %v575 = vadd.f32 %v571, %v574
    %s576 = sld [smem:[#allocation9 + $0x47]]
    %v577 = vstv %s576
    %v578 = vmul.f32 %v577, %v276
    %v579 = vadd.f32 %v575, %v578
    %v580 = vmax.f32 %v579, 0.0
    %s581 = sld [smem:[#allocation12 + $0x7]]
    %v582 = vstv %s581
    %v583 = vmul.f32 %v582, %v580
    %v584 = vadd.f32 %v541, %v583
    %s585 = sld [smem:[#allocation9 + $0x48]]
    %v586 = vstv %s585
    %v587 = vmul.f32 %v586, %v234
    %s588 = sld [smem:[#allocation10 + $0x8]]
    %v589 = vstv %s588
    %v590 = vadd.f32 %v587, %v589
    %s591 = sld [smem:[#allocation9 + $0x49]]
    %v592 = vstv %s591
    %v593 = vmul.f32 %v592, %v241
    %v594 = vadd.f32 %v590, %v593
    %s595 = sld [smem:[#allocation9 + $0x4a]]
    %v596 = vstv %s595
    %v597 = vmul.f32 %v596, %v246
    %v598 = vadd.f32 %v594, %v597
    %s599 = sld [smem:[#allocation9 + $0x4b]]
    %v600 = vstv %s599
    %v601 = vmul.f32 %v600, %v251
    %v602 = vadd.f32 %v598, %v601
    %s603 = sld [smem:[#allocation9 + $0x4c]]
    %v604 = vstv %s603
    %v605 = vmul.f32 %v604, %v256
    %v606 = vadd.f32 %v602, %v605
    %s607 = sld [smem:[#allocation9 + $0x4d]]
    %v608 = vstv %s607
    %v609 = vmul.f32 %v608, %v261
    %v610 = vadd.f32 %v606, %v609
    %s611 = sld [smem:[#allocation9 + $0x4e]]
    %v612 = vstv %s611
    %v613 = vmul.f32 %v612, %v266
    %v614 = vadd.f32 %v610, %v613
    %s615 = sld [smem:[#allocation9 + $0x4f]]
    %v616 = vstv %s615
    %v617 = vmul.f32 %v616, %v271
    %v618 = vadd.f32 %v614, %v617
    %s619 = sld [smem:[#allocation9 + $0x50]]
    %v620 = vstv %s619
    %v621 = vmul.f32 %v620, %v276
    %v622 = vadd.f32 %v618, %v621
    %v623 = vmax.f32 %v622, 0.0
    %s624 = sld [smem:[#allocation12 + $0x8]]
    %v625 = vstv %s624
    %v626 = vmul.f32 %v625, %v623
    %v627 = vadd.f32 %v584, %v626
    %s628 = sld [smem:[#allocation9 + $0x51]]
    %v629 = vstv %s628
    %v630 = vmul.f32 %v629, %v234
    %s631 = sld [smem:[#allocation10 + $0x9]]
    %v632 = vstv %s631
    %v633 = vadd.f32 %v630, %v632
    %s634 = sld [smem:[#allocation9 + $0x52]]
    %v635 = vstv %s634
    %v636 = vmul.f32 %v635, %v241
    %v637 = vadd.f32 %v633, %v636
    %s638 = sld [smem:[#allocation9 + $0x53]]
    %v639 = vstv %s638
    %v640 = vmul.f32 %v639, %v246
    %v641 = vadd.f32 %v637, %v640
    %s642 = sld [smem:[#allocation9 + $0x54]]
    %v643 = vstv %s642
    %v644 = vmul.f32 %v643, %v251
    %v645 = vadd.f32 %v641, %v644
    %s646 = sld [smem:[#allocation9 + $0x55]]
    %v647 = vstv %s646
    %v648 = vmul.f32 %v647, %v256
    %v649 = vadd.f32 %v645, %v648
    %s650 = sld [smem:[#allocation9 + $0x56]]
    %v651 = vstv %s650
    %v652 = vmul.f32 %v651, %v261
    %v653 = vadd.f32 %v649, %v652
    %s654 = sld [smem:[#allocation9 + $0x57]]
    %v655 = vstv %s654
    %v656 = vmul.f32 %v655, %v266
    %v657 = vadd.f32 %v653, %v656
    %s658 = sld [smem:[#allocation9 + $0x58]]
    %v659 = vstv %s658
    %v660 = vmul.f32 %v659, %v271
    %v661 = vadd.f32 %v657, %v660
    %s662 = sld [smem:[#allocation9 + $0x59]]
    %v663 = vstv %s662
    %v664 = vmul.f32 %v663, %v276
    %v665 = vadd.f32 %v661, %v664
    %v666 = vmax.f32 %v665, 0.0
    %s667 = sld [smem:[#allocation12 + $0x9]]
    %v668 = vstv %s667
    %v669 = vmul.f32 %v668, %v666
    %v670 = vadd.f32 %v627, %v669
    %s671 = sld [smem:[#allocation4]]
    %v672 = vstv %s671
    %v673 = vadd.f32 %v670, %v672
    %v674 = vmax.f32 %v673, 0.0
    %675 = vst [vmem:[#allocation13] sm:$0xf] %v674
    // Predicated region
    $region38: #{tpu_custom_call.1} parent=1 // pred_check
      _
    $region39: #{tpu_custom_call.1} parent=1 // pred_check_branch
      %677 = sbr.rel (0) target = $region41
    $region40: #{tpu_custom_call.1} parent=1 // pred_region
      %s679 = ssub.s32 64, 64
      %680 = vsyncadd [#allocation7], %s679
      %s682 = sshll.u32 [#allocation13], 4
      %s683 = int_to_ptr.vmem [resolvable:$true] %s682
      %685 = dma.vmem_to_hbm [thread:$0]  %s683, 64, %s5, [#allocation7]
    $region41: #{tpu_custom_call.1} parent=1 // pred_fallthru
      _
    // Predicated region
    $region42: #{tpu_custom_call.1} parent=1 // pred_check
      _
    $region43: #{tpu_custom_call.1} parent=1 // pred_check_branch
      %687 = sbr.rel (0) target = $region45
    $region44: #{tpu_custom_call.1} parent=1 // pred_region
      %688 = dma.done [#allocation7], 64
    $region45: #{tpu_custom_call.1} parent=1 // pred_fallthru
      _
    %689 = vsyncpa [#allocation6], 1
    %690 = vsyncpa [#allocation7], 1
    %691 = vsyncpa [#allocation8], 1
    %692 = vsyncpa [#allocation11], 1

</llo_original>
